<compile_context>
chip_gen: v6e
topology: v6e:2x2x1
jax: 0.10.0
libtpu: 0.0.40
codegen_flags: <defaults>
</compile_context>

<pallas_src>
import functools

import jax
import jax.numpy as jnp
from jax.experimental import pallas as pl
from jax.experimental.pallas import tpu as pltpu


def decoder_fuse_kernel(x0_ref, x1_ref, w0_ref, w1_ref, uw_ref, b_ref, o_ref,
                        *, g, f, W, Wc):
    """One (batch, spatial-tile) block of:  o = w0@x0 + nearest_up(w1@x1c) + b.

    Layout: channels on sublanes, flattened row-major spatial (H*W) on lanes.
    Fine tile = g*f*W lanes (g*f fine rows); coarse tile = g*Wc lanes (g rows).
    """
    x0 = x0_ref[0]                      # (C0, g*f*W)  fine activations, f32
    x1c = x1_ref[0]                     # (C1, g*Wc)   coarse activations, f32

    # 1x1 convs.  The coarse conv runs at coarse resolution -> f^2 less work
    # and no upsampled activation tensor is ever materialized.
    acc = jnp.dot(w0_ref[...], x0, preferred_element_type=jnp.float32)   # (Cout, ts)
    y1 = jnp.dot(w1_ref[...], x1c, preferred_element_type=jnp.float32)   # (Cout, g*Wc)

    # Nearest-neighbour upsample of the small (Cout, g*Wc) coarse *result*:
    #   width: tiny (Wc, W) one-hot matmul per coarse row (MXU has large slack)
    #   rows : each widened row is emitted f times via lane concatenation.
    pieces = []
    for r in range(g):                                   # static unroll, g is small
        row = jnp.dot(y1[:, r * Wc:(r + 1) * Wc], uw_ref[...],
                      preferred_element_type=jnp.float32)          # (Cout, W)
        pieces.extend([row] * f)
    up = jnp.concatenate(pieces, axis=-1) if len(pieces) > 1 else pieces[0]

    # f32 epilogue: bias add + single lane-dense full-tile store.
    o_ref[0] = (acc + up + b_ref[...]).astype(o_ref.dtype)


def _pick_coarse_rows_per_tile(H, W, Hc, Wc, f, batch,
                               target_lanes=16384, max_coarse_rows=32):
    """Coarse rows per tile g (fine tile = g*f*W lanes, coarse tile = g*Wc lanes)."""
    # Legal tiles: g divides Hc, and both tiles are 128-lane multiples or the
    # tile spans the full spatial extent (the (8,128) BlockSpec rule).
    aligned = [g for g in range(1, Hc + 1)
               if Hc % g == 0 and (g * f * W) % 128 == 0 and (g * Wc) % 128 == 0]
    cands = [g for g in aligned if g <= max_coarse_rows]
    if Hc <= max_coarse_rows:
        cands = sorted(set(cands) | {Hc})        # full-extent tile is always legal
    if not cands:
        # TODO(synk): pathological shapes (huge Hc, no 128-aligned row group)
        # would need W padding; take the smallest aligned tile / full extent.
        cands = aligned[:1] if aligned else [Hc]
    if batch == 1:
        # Keep >= 2 grid steps along a "parallel" axis so both v7x cores work.
        multi = [g for g in cands if Hc // g >= 2]
        cands = multi or cands
    under = [g for g in cands if g * f * W <= target_lanes]
    return under[-1] if under else cands[0]


def _width_upsample_matrix(Wc, W, f, dtype=jnp.float32):
    """U[c, w] = 1 iff fine column w maps to coarse column c (w // f == c)."""
    cols = jnp.arange(W, dtype=jnp.int32) // f
    rows = jnp.arange(Wc, dtype=jnp.int32)[:, None]
    return (rows == cols[None, :]).astype(dtype)


def decoder_forward(xs, params, in_strides, out_channels):
    """xs: [fine NCHW, coarse NCHW] feature maps (finest stride first) -> NCHW f32."""
    x0, x1 = xs
    w0, w1, b = params["w0"], params["w1"], params["b"]   # (Co,C0),(Co,C1),(Co,1)

    B, C0, H, W = x0.shape
    _, C1, Hc, Wc = x1.shape
    Cout = out_channels
    f = in_strides[1] // in_strides[0]
    assert Hc * f == H and Wc * f == W

    HW, HWc = H * W, Hc * Wc
    g = _pick_coarse_rows_per_tile(H, W, Hc, Wc, f, B)
    ts, tsc = g * f * W, g * Wc
    n_sp = Hc // g
    assert n_sp * ts == HW and n_sp * tsc == HWc

    # Free (row-major) reshapes: channels stay on sublanes, spatial -> lanes.
    # No dtype cast here: the kernel reads f32 straight from HBM.
    x0_f = x0.reshape(B, C0, HW)
    x1_f = x1.reshape(B, C1, HWc)
    uw = _width_upsample_matrix(Wc, W, f)

    # Double-buffered activations + output, (<=2x) constants, f32 intermediates.
    vmem_est = (2 * (C0 * ts + C1 * tsc) * 4
                + 2 * Cout * ts * 4
                + 2 * (Cout * (C0 + C1) + Wc * W + Cout) * 4
                + 4 * Cout * ts * 4)
    vmem_limit = int(min(max(2 * vmem_est, 8 * 2**20), 32 * 2**20))

    cost = pl.CostEstimate(
        flops=int(2 * B * HW * Cout * C0 + 2 * B * HWc * Cout * C1
                  + 2 * B * HWc * Cout * W),
        transcendentals=0,
        bytes_accessed=int(4 * (x0_f.size + x1_f.size + B * Cout * HW
                                + w0.size + w1.size + uw.size + b.size)),
    )

    kernel = functools.partial(decoder_fuse_kernel, g=g, f=f, W=W, Wc=Wc)

    def build(single_buffer_consts):
        const_kw = (dict(pipeline_mode=pl.Buffered(1))
                    if single_buffer_consts else {})
        in_specs = [
            pl.BlockSpec((1, C0, ts), lambda bi, si: (bi, 0, si)),         # fine act.
            pl.BlockSpec((1, C1, tsc), lambda bi, si: (bi, 0, si)),        # coarse act.
            pl.BlockSpec((Cout, C0), lambda bi, si: (0, 0), **const_kw),   # w0
            pl.BlockSpec((Cout, C1), lambda bi, si: (0, 0), **const_kw),   # w1
            pl.BlockSpec((Wc, W), lambda bi, si: (0, 0), **const_kw),      # width one-hot
            pl.BlockSpec((Cout, 1), lambda bi, si: (0, 0), **const_kw),    # bias
        ]
        return pl.pallas_call(
            kernel,
            out_shape=jax.ShapeDtypeStruct((B, Cout, HW), jnp.float32),
            grid=(B, n_sp),
            in_specs=in_specs,
            out_specs=pl.BlockSpec((1, Cout, ts), lambda bi, si: (bi, 0, si)),
            compiler_params=pltpu.CompilerParams(
                dimension_semantics=("parallel", "parallel"),
                vmem_limit_bytes=vmem_limit),
            cost_estimate=cost,
        )

    try:
        out_flat = build(True)(x0_f, x1_f, w0, w1, uw, b)
    except Exception:
        # TODO(synk): single-buffering constants via pl.Buffered(1) is
        # best-effort; fall back to default double buffering if rejected.
        out_flat = build(False)(x0_f, x1_f, w0, w1, uw, b)

    return out_flat.reshape(B, Cout, H, W)   # free reshape back to NCHW


def init_params(key, in_channels, out_channels):
    k0, k1, k2 = jax.random.split(key, 3)
    # 1x1 conv weights stored PyTorch-style as (Cout, Cin) so the kernel does w @ x.
    w0 = jax.random.normal(k0, (out_channels, in_channels[0]), jnp.float32) * 0.1
    w1 = jax.random.normal(k1, (out_channels, in_channels[1]), jnp.float32) * 0.1
    b = jax.random.normal(k2, (out_channels, 1), jnp.float32) * 0.01
    return {"w0": w0, "w1": w1, "b": b}


if __name__ == "__main__":
    key = jax.random.PRNGKey(0)
    k_x0, k_x1, k_p = jax.random.split(key, 3)

    # DecoderSpec config
    in_channels = [4, 8]
    in_strides = [4, 8]
    out_channels = 8

    # Small example inputs (NCHW): finest level 16x16, coarse level 8x8.
    B = 2
    x0 = jax.random.normal(k_x0, (B, in_channels[0], 16, 16), jnp.float32)
    x1 = jax.random.normal(k_x1, (B, in_channels[1], 8, 8), jnp.float32)
    params = init_params(k_p, in_channels, out_channels)

    out = decoder_forward([x0, x1], params, in_strides, out_channels)
    out = jax.block_until_ready(out)

    # Pure-JAX f32 reference (1x1 convs + nearest upsample of the coarse level).
    f = in_strides[1] // in_strides[0]
    x1_up = jnp.repeat(jnp.repeat(x1, f, axis=2), f, axis=3)
    ref = (jnp.einsum("oc,bchw->bohw", params["w0"], x0)
           + jnp.einsum("oc,bchw->bohw", params["w1"], x1_up)
           + params["b"].reshape(1, out_channels, 1, 1))

    assert out.shape == (B, out_channels, 16, 16)
    err = float(jnp.max(jnp.abs(out - ref)))
    assert jnp.allclose(out, ref, atol=2e-2, rtol=2e-2), err

    print("KERNEL_OK")
</pallas_src>

<mosaic_0001>
module attributes {stable_mosaic.version = 11 : i64} {
  func.func @decoder_fuse_kernel(%arg0: i32, %arg1: i32, %arg2: memref<1x4x256xf32, #tpu.memory_space<vmem>>, %arg3: memref<1x8x64xf32, #tpu.memory_space<vmem>>, %arg4: memref<8x4xf32, #tpu.memory_space<vmem>>, %arg5: memref<8x8xf32, #tpu.memory_space<vmem>>, %arg6: memref<8x16xf32, #tpu.memory_space<vmem>>, %arg7: memref<8x1xf32, #tpu.memory_space<vmem>>, %arg8: memref<1x8x256xf32, #tpu.memory_space<vmem>>) attributes {dimension_semantics = [#tpu.dimension_semantics<parallel>, #tpu.dimension_semantics<parallel>], iteration_bounds = array<i64: 2, 1>, scalar_prefetch = 0 : i64, scratch_operands = 0 : i64, tpu.core_type = #tpu.core_type<tc>, window_params = [{transform_indices = @transform_0, window_bounds = array<i64: 1, 4, 256>}, {transform_indices = @transform_1, window_bounds = array<i64: 1, 8, 64>}, {pipeline_mode = #tpu.pipeline_mode<synchronous>, transform_indices = @transform_2, window_bounds = array<i64: 8, 4>}, {pipeline_mode = #tpu.pipeline_mode<synchronous>, transform_indices = @transform_3, window_bounds = array<i64: 8, 8>}, {pipeline_mode = #tpu.pipeline_mode<synchronous>, transform_indices = @transform_4, window_bounds = array<i64: 8, 16>}, {pipeline_mode = #tpu.pipeline_mode<synchronous>, transform_indices = @transform_5, window_bounds = array<i64: 8, 1>}, {transform_indices = @transform_6, window_bounds = array<i64: 1, 8, 256>}]} {
    %c0 = arith.constant 0 : index
    %c0_0 = arith.constant 0 : index
    %c0_1 = arith.constant 0 : index
    %0 = vector.load %arg2[%c0, %c0_0, %c0_1] : memref<1x4x256xf32, #tpu.memory_space<vmem>>, vector<1x4x256xf32>
    %1 = vector.shape_cast %0 : vector<1x4x256xf32> to vector<4x256xf32>
    %c0_2 = arith.constant 0 : index
    %c0_3 = arith.constant 0 : index
    %c0_4 = arith.constant 0 : index
    %2 = vector.load %arg3[%c0_2, %c0_3, %c0_4] : memref<1x8x64xf32, #tpu.memory_space<vmem>>, vector<1x8x64xf32>
    %3 = vector.shape_cast %2 : vector<1x8x64xf32> to vector<8x64xf32>
    %c0_5 = arith.constant 0 : index
    %c0_6 = arith.constant 0 : index
    %4 = vector.load %arg4[%c0_5, %c0_6] : memref<8x4xf32, #tpu.memory_space<vmem>>, vector<8x4xf32>
    %cst = arith.constant dense<0.000000e+00> : vector<8x256xf32>
    %5 = tpu.matmul %4, %1, %cst {dimension_numbers = #tpu.dot_dimension_numbers<[1], [0], [0], [1], [0, 0, 1, 1], [], []>} : vector<8x4xf32>, vector<4x256xf32>, vector<8x256xf32> -> vector<8x256xf32>
    %c0_7 = arith.constant 0 : index
    %c0_8 = arith.constant 0 : index
    %6 = vector.load %arg5[%c0_7, %c0_8] : memref<8x8xf32, #tpu.memory_space<vmem>>, vector<8x8xf32>
    %cst_9 = arith.constant dense<0.000000e+00> : vector<8x64xf32>
    %7 = tpu.matmul %6, %3, %cst_9 {dimension_numbers = #tpu.dot_dimension_numbers<[1], [0], [0], [1], [0, 0, 1, 1], [], []>} : vector<8x8xf32>, vector<8x64xf32>, vector<8x64xf32> -> vector<8x64xf32>
    %8 = vector.extract_strided_slice %7 {offsets = [0, 0], sizes = [8, 8], strides = [1, 1]} : vector<8x64xf32> to vector<8x8xf32>
    %c0_10 = arith.constant 0 : index
    %c0_11 = arith.constant 0 : index
    %9 = vector.load %arg6[%c0_10, %c0_11] : memref<8x16xf32, #tpu.memory_space<vmem>>, vector<8x16xf32>
    %cst_12 = arith.constant dense<0.000000e+00> : vector<8x16xf32>
    %10 = tpu.matmul %8, %9, %cst_12 {dimension_numbers = #tpu.dot_dimension_numbers<[1], [0], [0], [1], [0, 0, 1, 1], [], []>} : vector<8x8xf32>, vector<8x16xf32>, vector<8x16xf32> -> vector<8x16xf32>
    %11 = vector.extract_strided_slice %7 {offsets = [0, 8], sizes = [8, 8], strides = [1, 1]} : vector<8x64xf32> to vector<8x8xf32>
    %c0_13 = arith.constant 0 : index
    %c0_14 = arith.constant 0 : index
    %12 = vector.load %arg6[%c0_13, %c0_14] : memref<8x16xf32, #tpu.memory_space<vmem>>, vector<8x16xf32>
    %cst_15 = arith.constant dense<0.000000e+00> : vector<8x16xf32>
    %13 = tpu.matmul %11, %12, %cst_15 {dimension_numbers = #tpu.dot_dimension_numbers<[1], [0], [0], [1], [0, 0, 1, 1], [], []>} : vector<8x8xf32>, vector<8x16xf32>, vector<8x16xf32> -> vector<8x16xf32>
    %14 = vector.extract_strided_slice %7 {offsets = [0, 16], sizes = [8, 8], strides = [1, 1]} : vector<8x64xf32> to vector<8x8xf32>
    %c0_16 = arith.constant 0 : index
    %c0_17 = arith.constant 0 : index
    %15 = vector.load %arg6[%c0_16, %c0_17] : memref<8x16xf32, #tpu.memory_space<vmem>>, vector<8x16xf32>
    %cst_18 = arith.constant dense<0.000000e+00> : vector<8x16xf32>
    %16 = tpu.matmul %14, %15, %cst_18 {dimension_numbers = #tpu.dot_dimension_numbers<[1], [0], [0], [1], [0, 0, 1, 1], [], []>} : vector<8x8xf32>, vector<8x16xf32>, vector<8x16xf32> -> vector<8x16xf32>
    %17 = vector.extract_strided_slice %7 {offsets = [0, 24], sizes = [8, 8], strides = [1, 1]} : vector<8x64xf32> to vector<8x8xf32>
    %c0_19 = arith.constant 0 : index
    %c0_20 = arith.constant 0 : index
    %18 = vector.load %arg6[%c0_19, %c0_20] : memref<8x16xf32, #tpu.memory_space<vmem>>, vector<8x16xf32>
    %cst_21 = arith.constant dense<0.000000e+00> : vector<8x16xf32>
    %19 = tpu.matmul %17, %18, %cst_21 {dimension_numbers = #tpu.dot_dimension_numbers<[1], [0], [0], [1], [0, 0, 1, 1], [], []>} : vector<8x8xf32>, vector<8x16xf32>, vector<8x16xf32> -> vector<8x16xf32>
    %20 = vector.extract_strided_slice %7 {offsets = [0, 32], sizes = [8, 8], strides = [1, 1]} : vector<8x64xf32> to vector<8x8xf32>
    %c0_22 = arith.constant 0 : index
    %c0_23 = arith.constant 0 : index
    %21 = vector.load %arg6[%c0_22, %c0_23] : memref<8x16xf32, #tpu.memory_space<vmem>>, vector<8x16xf32>
    %cst_24 = arith.constant dense<0.000000e+00> : vector<8x16xf32>
    %22 = tpu.matmul %20, %21, %cst_24 {dimension_numbers = #tpu.dot_dimension_numbers<[1], [0], [0], [1], [0, 0, 1, 1], [], []>} : vector<8x8xf32>, vector<8x16xf32>, vector<8x16xf32> -> vector<8x16xf32>
    %23 = vector.extract_strided_slice %7 {offsets = [0, 40], sizes = [8, 8], strides = [1, 1]} : vector<8x64xf32> to vector<8x8xf32>
    %c0_25 = arith.constant 0 : index
    %c0_26 = arith.constant 0 : index
    %24 = vector.load %arg6[%c0_25, %c0_26] : memref<8x16xf32, #tpu.memory_space<vmem>>, vector<8x16xf32>
    %cst_27 = arith.constant dense<0.000000e+00> : vector<8x16xf32>
    %25 = tpu.matmul %23, %24, %cst_27 {dimension_numbers = #tpu.dot_dimension_numbers<[1], [0], [0], [1], [0, 0, 1, 1], [], []>} : vector<8x8xf32>, vector<8x16xf32>, vector<8x16xf32> -> vector<8x16xf32>
    %26 = vector.extract_strided_slice %7 {offsets = [0, 48], sizes = [8, 8], strides = [1, 1]} : vector<8x64xf32> to vector<8x8xf32>
    %c0_28 = arith.constant 0 : index
    %c0_29 = arith.constant 0 : index
    %27 = vector.load %arg6[%c0_28, %c0_29] : memref<8x16xf32, #tpu.memory_space<vmem>>, vector<8x16xf32>
    %cst_30 = arith.constant dense<0.000000e+00> : vector<8x16xf32>
    %28 = tpu.matmul %26, %27, %cst_30 {dimension_numbers = #tpu.dot_dimension_numbers<[1], [0], [0], [1], [0, 0, 1, 1], [], []>} : vector<8x8xf32>, vector<8x16xf32>, vector<8x16xf32> -> vector<8x16xf32>
    %29 = vector.extract_strided_slice %7 {offsets = [0, 56], sizes = [8, 8], strides = [1, 1]} : vector<8x64xf32> to vector<8x8xf32>
    %c0_31 = arith.constant 0 : index
    %c0_32 = arith.constant 0 : index
    %30 = vector.load %arg6[%c0_31, %c0_32] : memref<8x16xf32, #tpu.memory_space<vmem>>, vector<8x16xf32>
    %cst_33 = arith.constant dense<0.000000e+00> : vector<8x16xf32>
    %31 = tpu.matmul %29, %30, %cst_33 {dimension_numbers = #tpu.dot_dimension_numbers<[1], [0], [0], [1], [0, 0, 1, 1], [], []>} : vector<8x8xf32>, vector<8x16xf32>, vector<8x16xf32> -> vector<8x16xf32>
    %32 = tpu.concatenate %10, %10, %13, %13, %16, %16, %19, %19, %22, %22, %25, %25, %28, %28, %31, %31 in 1 : vector<8x16xf32>, vector<8x16xf32>, vector<8x16xf32>, vector<8x16xf32>, vector<8x16xf32>, vector<8x16xf32>, vector<8x16xf32>, vector<8x16xf32>, vector<8x16xf32>, vector<8x16xf32>, vector<8x16xf32>, vector<8x16xf32>, vector<8x16xf32>, vector<8x16xf32>, vector<8x16xf32>, vector<8x16xf32> -> vector<8x256xf32>
    %33 = arith.addf %5, %32 : vector<8x256xf32>
    %c0_34 = arith.constant 0 : index
    %c0_35 = arith.constant 0 : index
    %34 = vector.load %arg7[%c0_34, %c0_35] : memref<8x1xf32, #tpu.memory_space<vmem>>, vector<8x1xf32>
    %35 = vector.broadcast %34 : vector<8x1xf32> to vector<8x256xf32>
    %36 = arith.addf %33, %35 : vector<8x256xf32>
    %c0_36 = arith.constant 0 : index
    %c0_37 = arith.constant 0 : index
    %c0_38 = arith.constant 0 : index
    %37 = vector.load %arg8[%c0_36, %c0_37, %c0_38] : memref<1x8x256xf32, #tpu.memory_space<vmem>>, vector<1x8x256xf32>
    %38 = vector.shape_cast %37 : vector<1x8x256xf32> to vector<8x256xf32>
    %39 = vector.shape_cast %36 : vector<8x256xf32> to vector<1x8x256xf32>
    tpu.vector_store %arg8[%c0_36, %c0_37, %c0_38], %39 {strides = array<i32>} : memref<1x8x256xf32, #tpu.memory_space<vmem>>, vector<1x8x256xf32>,
    return
  }
  func.func @transform_0(%arg0: i32, %arg1: i32) -> (i32, i32, i32) {
    %c0_i32 = arith.constant 0 : i32
    %c0_i32_0 = arith.constant 0 : i32
    return %arg0, %c0_i32, %arg1 : i32, i32, i32
  }
  func.func @transform_1(%arg0: i32, %arg1: i32) -> (i32, i32, i32) {
    %c0_i32 = arith.constant 0 : i32
    %c0_i32_0 = arith.constant 0 : i32
    return %arg0, %c0_i32, %arg1 : i32, i32, i32
  }
  func.func @transform_2(%arg0: i32, %arg1: i32) -> (i32, i32) {
    %c0_i32 = arith.constant 0 : i32
    %c0_i32_0 = arith.constant 0 : i32
    %c0_i32_1 = arith.constant 0 : i32
    return %c0_i32, %c0_i32_0 : i32, i32
  }
  func.func @transform_3(%arg0: i32, %arg1: i32) -> (i32, i32) {
    %c0_i32 = arith.constant 0 : i32
    %c0_i32_0 = arith.constant 0 : i32
    %c0_i32_1 = arith.constant 0 : i32
    return %c0_i32, %c0_i32_0 : i32, i32
  }
  func.func @transform_4(%arg0: i32, %arg1: i32) -> (i32, i32) {
    %c0_i32 = arith.constant 0 : i32
    %c0_i32_0 = arith.constant 0 : i32
    %c0_i32_1 = arith.constant 0 : i32
    return %c0_i32, %c0_i32_0 : i32, i32
  }
  func.func @transform_5(%arg0: i32, %arg1: i32) -> (i32, i32) {
    %c0_i32 = arith.constant 0 : i32
    %c0_i32_0 = arith.constant 0 : i32
    %c0_i32_1 = arith.constant 0 : i32
    return %c0_i32, %c0_i32_0 : i32, i32
  }
  func.func @transform_6(%arg0: i32, %arg1: i32) -> (i32, i32, i32) {
    %c0_i32 = arith.constant 0 : i32
    %c0_i32_0 = arith.constant 0 : i32
    return %arg0, %c0_i32, %arg1 : i32, i32, i32
  }
}

module attributes {stable_mosaic.version = 11 : i64} {
  func.func @decoder_fuse_kernel(%arg0: i32, %arg1: i32, %arg2: memref<1x4x256xf32, #tpu.memory_space<vmem>>, %arg3: memref<1x8x64xf32, #tpu.memory_space<vmem>>, %arg4: memref<8x4xf32, #tpu.memory_space<vmem>>, %arg5: memref<8x8xf32, #tpu.memory_space<vmem>>, %arg6: memref<8x16xf32, #tpu.memory_space<vmem>>, %arg7: memref<8x1xf32, #tpu.memory_space<vmem>>, %arg8: memref<1x8x256xf32, #tpu.memory_space<vmem>>) attributes {dimension_semantics = [#tpu.dimension_semantics<parallel>, #tpu.dimension_semantics<parallel>], iteration_bounds = array<i64: 2, 1>, scalar_prefetch = 0 : i64, scratch_operands = 0 : i64, tpu.core_type = #tpu.core_type<tc>, window_params = [{transform_indices = @transform_0, window_bounds = array<i64: 1, 4, 256>}, {transform_indices = @transform_1, window_bounds = array<i64: 1, 8, 64>}, {pipeline_mode = #tpu.pipeline_mode<synchronous>, transform_indices = @transform_2, window_bounds = array<i64: 8, 4>}, {pipeline_mode = #tpu.pipeline_mode<synchronous>, transform_indices = @transform_3, window_bounds = array<i64: 8, 8>}, {pipeline_mode = #tpu.pipeline_mode<synchronous>, transform_indices = @transform_4, window_bounds = array<i64: 8, 16>}, {pipeline_mode = #tpu.pipeline_mode<synchronous>, transform_indices = @transform_5, window_bounds = array<i64: 8, 1>}, {transform_indices = @transform_6, window_bounds = array<i64: 1, 8, 256>}]} {
    %c0 = arith.constant 0 : index
    %c0_0 = arith.constant 0 : index
    %c0_1 = arith.constant 0 : index
    %0 = vector.load %arg2[%c0, %c0_0, %c0_1] : memref<1x4x256xf32, #tpu.memory_space<vmem>>, vector<1x4x256xf32>
    %1 = vector.shape_cast %0 : vector<1x4x256xf32> to vector<4x256xf32>
    %c0_2 = arith.constant 0 : index
    %c0_3 = arith.constant 0 : index
    %c0_4 = arith.constant 0 : index
    %2 = vector.load %arg3[%c0_2, %c0_3, %c0_4] : memref<1x8x64xf32, #tpu.memory_space<vmem>>, vector<1x8x64xf32>
    %3 = vector.shape_cast %2 : vector<1x8x64xf32> to vector<8x64xf32>
    %c0_5 = arith.constant 0 : index
    %c0_6 = arith.constant 0 : index
    %4 = vector.load %arg4[%c0_5, %c0_6] : memref<8x4xf32, #tpu.memory_space<vmem>>, vector<8x4xf32>
    %cst = arith.constant dense<0.000000e+00> : vector<8x256xf32>
    %5 = tpu.matmul %4, %1, %cst {dimension_numbers = #tpu.dot_dimension_numbers<[1], [0], [0], [1], [0, 0, 1, 1], [], []>} : vector<8x4xf32>, vector<4x256xf32>, vector<8x256xf32> -> vector<8x256xf32>
    %c0_7 = arith.constant 0 : index
    %c0_8 = arith.constant 0 : index
    %6 = vector.load %arg5[%c0_7, %c0_8] : memref<8x8xf32, #tpu.memory_space<vmem>>, vector<8x8xf32>
    %cst_9 = arith.constant dense<0.000000e+00> : vector<8x64xf32>
    %7 = tpu.matmul %6, %3, %cst_9 {dimension_numbers = #tpu.dot_dimension_numbers<[1], [0], [0], [1], [0, 0, 1, 1], [], []>} : vector<8x8xf32>, vector<8x64xf32>, vector<8x64xf32> -> vector<8x64xf32>
    %8 = vector.extract_strided_slice %7 {offsets = [0, 0], sizes = [8, 8], strides = [1, 1]} : vector<8x64xf32> to vector<8x8xf32>
    %c0_10 = arith.constant 0 : index
    %c0_11 = arith.constant 0 : index
    %9 = vector.load %arg6[%c0_10, %c0_11] : memref<8x16xf32, #tpu.memory_space<vmem>>, vector<8x16xf32>
    %cst_12 = arith.constant dense<0.000000e+00> : vector<8x16xf32>
    %10 = tpu.matmul %8, %9, %cst_12 {dimension_numbers = #tpu.dot_dimension_numbers<[1], [0], [0], [1], [0, 0, 1, 1], [], []>} : vector<8x8xf32>, vector<8x16xf32>, vector<8x16xf32> -> vector<8x16xf32>
    %11 = vector.extract_strided_slice %7 {offsets = [0, 8], sizes = [8, 8], strides = [1, 1]} : vector<8x64xf32> to vector<8x8xf32>
    %c0_13 = arith.constant 0 : index
    %c0_14 = arith.constant 0 : index
    %12 = vector.load %arg6[%c0_13, %c0_14] : memref<8x16xf32, #tpu.memory_space<vmem>>, vector<8x16xf32>
    %cst_15 = arith.constant dense<0.000000e+00> : vector<8x16xf32>
    %13 = tpu.matmul %11, %12, %cst_15 {dimension_numbers = #tpu.dot_dimension_numbers<[1], [0], [0], [1], [0, 0, 1, 1], [], []>} : vector<8x8xf32>, vector<8x16xf32>, vector<8x16xf32> -> vector<8x16xf32>
    %14 = vector.extract_strided_slice %7 {offsets = [0, 16], sizes = [8, 8], strides = [1, 1]} : vector<8x64xf32> to vector<8x8xf32>
    %c0_16 = arith.constant 0 : index
    %c0_17 = arith.constant 0 : index
    %15 = vector.load %arg6[%c0_16, %c0_17] : memref<8x16xf32, #tpu.memory_space<vmem>>, vector<8x16xf32>
    %cst_18 = arith.constant dense<0.000000e+00> : vector<8x16xf32>
    %16 = tpu.matmul %14, %15, %cst_18 {dimension_numbers = #tpu.dot_dimension_numbers<[1], [0], [0], [1], [0, 0, 1, 1], [], []>} : vector<8x8xf32>, vector<8x16xf32>, vector<8x16xf32> -> vector<8x16xf32>
    %17 = vector.extract_strided_slice %7 {offsets = [0, 24], sizes = [8, 8], strides = [1, 1]} : vector<8x64xf32> to vector<8x8xf32>
    %c0_19 = arith.constant 0 : index
    %c0_20 = arith.constant 0 : index
    %18 = vector.load %arg6[%c0_19, %c0_20] : memref<8x16xf32, #tpu.memory_space<vmem>>, vector<8x16xf32>
    %cst_21 = arith.constant dense<0.000000e+00> : vector<8x16xf32>
    %19 = tpu.matmul %17, %18, %cst_21 {dimension_numbers = #tpu.dot_dimension_numbers<[1], [0], [0], [1], [0, 0, 1, 1], [], []>} : vector<8x8xf32>, vector<8x16xf32>, vector<8x16xf32> -> vector<8x16xf32>
    %20 = vector.extract_strided_slice %7 {offsets = [0, 32], sizes = [8, 8], strides = [1, 1]} : vector<8x64xf32> to vector<8x8xf32>
    %c0_22 = arith.constant 0 : index
    %c0_23 = arith.constant 0 : index
    %21 = vector.load %arg6[%c0_22, %c0_23] : memref<8x16xf32, #tpu.memory_space<vmem>>, vector<8x16xf32>
    %cst_24 = arith.constant dense<0.000000e+00> : vector<8x16xf32>
    %22 = tpu.matmul %20, %21, %cst_24 {dimension_numbers = #tpu.dot_dimension_numbers<[1], [0], [0], [1], [0, 0, 1, 1], [], []>} : vector<8x8xf32>, vector<8x16xf32>, vector<8x16xf32> -> vector<8x16xf32>
    %23 = vector.extract_strided_slice %7 {offsets = [0, 40], sizes = [8, 8], strides = [1, 1]} : vector<8x64xf32> to vector<8x8xf32>
    %c0_25 = arith.constant 0 : index
    %c0_26 = arith.constant 0 : index
    %24 = vector.load %arg6[%c0_25, %c0_26] : memref<8x16xf32, #tpu.memory_space<vmem>>, vector<8x16xf32>
    %cst_27 = arith.constant dense<0.000000e+00> : vector<8x16xf32>
    %25 = tpu.matmul %23, %24, %cst_27 {dimension_numbers = #tpu.dot_dimension_numbers<[1], [0], [0], [1], [0, 0, 1, 1], [], []>} : vector<8x8xf32>, vector<8x16xf32>, vector<8x16xf32> -> vector<8x16xf32>
    %26 = vector.extract_strided_slice %7 {offsets = [0, 48], sizes = [8, 8], strides = [1, 1]} : vector<8x64xf32> to vector<8x8xf32>
    %c0_28 = arith.constant 0 : index
    %c0_29 = arith.constant 0 : index
    %27 = vector.load %arg6[%c0_28, %c0_29] : memref<8x16xf32, #tpu.memory_space<vmem>>, vector<8x16xf32>
    %cst_30 = arith.constant dense<0.000000e+00> : vector<8x16xf32>
    %28 = tpu.matmul %26, %27, %cst_30 {dimension_numbers = #tpu.dot_dimension_numbers<[1], [0], [0], [1], [0, 0, 1, 1], [], []>} : vector<8x8xf32>, vector<8x16xf32>, vector<8x16xf32> -> vector<8x16xf32>
    %29 = vector.extract_strided_slice %7 {offsets = [0, 56], sizes = [8, 8], strides = [1, 1]} : vector<8x64xf32> to vector<8x8xf32>
    %c0_31 = arith.constant 0 : index
    %c0_32 = arith.constant 0 : index
    %30 = vector.load %arg6[%c0_31, %c0_32] : memref<8x16xf32, #tpu.memory_space<vmem>>, vector<8x16xf32>
    %cst_33 = arith.constant dense<0.000000e+00> : vector<8x16xf32>
    %31 = tpu.matmul %29, %30, %cst_33 {dimension_numbers = #tpu.dot_dimension_numbers<[1], [0], [0], [1], [0, 0, 1, 1], [], []>} : vector<8x8xf32>, vector<8x16xf32>, vector<8x16xf32> -> vector<8x16xf32>
    %32 = tpu.concatenate %10, %10, %13, %13, %16, %16, %19, %19, %22, %22, %25, %25, %28, %28, %31, %31 in 1 : vector<8x16xf32>, vector<8x16xf32>, vector<8x16xf32>, vector<8x16xf32>, vector<8x16xf32>, vector<8x16xf32>, vector<8x16xf32>, vector<8x16xf32>, vector<8x16xf32>, vector<8x16xf32>, vector<8x16xf32>, vector<8x16xf32>, vector<8x16xf32>, vector<8x16xf32>, vector<8x16xf32>, vector<8x16xf32> -> vector<8x256xf32>
    %33 = arith.addf %5, %32 : vector<8x256xf32>
    %c0_34 = arith.constant 0 : index
    %c0_35 = arith.constant 0 : index
    %34 = vector.load %arg7[%c0_34, %c0_35] : memref<8x1xf32, #tpu.memory_space<vmem>>, vector<8x1xf32>
    %35 = vector.broadcast %34 : vector<8x1xf32> to vector<8x256xf32>
    %36 = arith.addf %33, %35 : vector<8x256xf32>
    %c0_36 = arith.constant 0 : index
    %c0_37 = arith.constant 0 : index
    %c0_38 = arith.constant 0 : index
    %37 = vector.load %arg8[%c0_36, %c0_37, %c0_38] : memref<1x8x256xf32, #tpu.memory_space<vmem>>, vector<1x8x256xf32>
    %38 = vector.shape_cast %37 : vector<1x8x256xf32> to vector<8x256xf32>
    %39 = vector.shape_cast %36 : vector<8x256xf32> to vector<1x8x256xf32>
    tpu.vector_store %arg8[%c0_36, %c0_37, %c0_38], %39 {strides = array<i32>} : memref<1x8x256xf32, #tpu.memory_space<vmem>>, vector<1x8x256xf32>,
    return
  }
  func.func @transform_0(%arg0: i32, %arg1: i32) -> (i32, i32, i32) {
    %c0_i32 = arith.constant 0 : i32
    %c0_i32_0 = arith.constant 0 : i32
    return %arg0, %c0_i32, %arg1 : i32, i32, i32
  }
  func.func @transform_1(%arg0: i32, %arg1: i32) -> (i32, i32, i32) {
    %c0_i32 = arith.constant 0 : i32
    %c0_i32_0 = arith.constant 0 : i32
    return %arg0, %c0_i32, %arg1 : i32, i32, i32
  }
  func.func @transform_2(%arg0: i32, %arg1: i32) -> (i32, i32) {
    %c0_i32 = arith.constant 0 : i32
    %c0_i32_0 = arith.constant 0 : i32
    %c0_i32_1 = arith.constant 0 : i32
    return %c0_i32, %c0_i32_0 : i32, i32
  }
  func.func @transform_3(%arg0: i32, %arg1: i32) -> (i32, i32) {
    %c0_i32 = arith.constant 0 : i32
    %c0_i32_0 = arith.constant 0 : i32
    %c0_i32_1 = arith.constant 0 : i32
    return %c0_i32, %c0_i32_0 : i32, i32
  }
  func.func @transform_4(%arg0: i32, %arg1: i32) -> (i32, i32) {
    %c0_i32 = arith.constant 0 : i32
    %c0_i32_0 = arith.constant 0 : i32
    %c0_i32_1 = arith.constant 0 : i32
    return %c0_i32, %c0_i32_0 : i32, i32
  }
  func.func @transform_5(%arg0: i32, %arg1: i32) -> (i32, i32) {
    %c0_i32 = arith.constant 0 : i32
    %c0_i32_0 = arith.constant 0 : i32
    %c0_i32_1 = arith.constant 0 : i32
    return %c0_i32, %c0_i32_0 : i32, i32
  }
  func.func @transform_6(%arg0: i32, %arg1: i32) -> (i32, i32, i32) {
    %c0_i32 = arith.constant 0 : i32
    %c0_i32_0 = arith.constant 0 : i32
    return %arg0, %c0_i32, %arg1 : i32, i32, i32
  }
}

</mosaic_0001>

<llo_original>
// kernel: tpu_custom_call.1
$region0: #{tpu_custom_call.1}
  #allocation0 [shape = 'u32[]', space=smem, size = 0x4, offset = 0x4, fixed_abs, tag = 'smem constant byte address 0x4 - core index']
  #allocation1 [shape = 'u32[144,128]{1,0:T(1,128)}', space=vmem, size = 0x12000, scoped, tag = 'internal scratch']
  %s0 = inlined_call_operand.vmem [shape: f32[2,4,256], index: 0, kind: input, shape index: {}]
  %s1 = inlined_call_operand.hbm [shape: f32[2,8,64], index: 1, kind: input, shape index: {}]
  %s2 = inlined_call_operand.vmem [shape: f32[8,4], index: 2, kind: input, shape index: {}]
  %s3 = inlined_call_operand.vmem [shape: f32[8,8], index: 3, kind: input, shape index: {}]
  %s4 = inlined_call_operand.hbm [shape: f32[8,16], index: 4, kind: input, shape index: {}]
  %s5 = inlined_call_operand.vmem [shape: f32[8,1], index: 5, kind: input, shape index: {}]
  %s6 = inlined_call_operand.hbm [shape: f32[2,8,256], index: 6, kind: output, shape index: {}]
  %s7 = sld [smem:[#allocation0]]
  $region65: #{tpu_custom_call.1} parent=0
    _
  %s9 = ssub.s32 1, %s7
  %s10 = scalar_select 0, %s9, %s7
  $region1: #{tpu_custom_call.1} parent=0
    #allocation2 [shape = 'u8[8192]{0}', space=vmem, size = 0x2000, scoped, tag = 'input window, operand 1']
    #allocation3 [shape = 's32[2]{0}', space=sflag, size = 0x8, scoped, tag = 'scoped memory for tpu_custom_call.1']
    #allocation4 [shape = 's32[2]{0}', space=sflag, size = 0x8, scoped, tag = 'scoped memory for tpu_custom_call.1']
    #allocation5 [shape = 'u8[4096]{0}', space=vmem, size = 0x1000, scoped, tag = 'input window, operand 4, single buffered']
    #allocation6 [shape = 's32[1]{0}', space=sflag, size = 0x4, scoped, tag = 'scoped memory for tpu_custom_call.1']
    #allocation7 [shape = 'u8[16384]{0}', space=vmem, size = 0x4000, scoped, tag = 'output window, operand 0']
    %11 = vsyncpa [#allocation3], 0
    %s12 = scalar_lea.sflag [#allocation3], 1
    %13 = vsyncpa %s12, 0
    %14 = vsyncpa [#allocation6], 0
    %15 = vsyncpa [#allocation4], 0
    %s16 = scalar_lea.sflag [#allocation4], 1
    %17 = vsyncpa %s16, 0
    loop: start=0, step=1, limit=4
    $region2: #{tpu_custom_call.1} parent=1 // loop_pre_header
      _
    $region3: #{tpu_custom_call.1} parent=1 // loop_header
      %s19 = sphi 0, %s23
      %p20 = scmp.ge.s32.totalorder %s19, 4
      %s26 = sphi 0, %s38
      %s27 = sphi 0, %s34
      %s28 = sphi 0, %s26
      %s29 = sphi 0, %s27
      %s30 = sphi 0, %s28
      %s31 = sphi 0, %s29
      %s43 = sphi 0, %s45
      %s46 = sphi 0, %s43
      %s47 = sphi 0, %s46
      %s63 = sphi 0, %s47
      %s71 = sphi 0, %s73
      %s74 = sphi 0, %s71
      %s75 = sphi 0, %s74
      %s91 = sphi 0, %s75
      %s95 = sphi 0, %s95
      %s97 = sphi 0, %s95
      %s98 = sphi 0, %s97
      %s112 = sphi 0, %s98
      %s116 = sphi 0, %s116
      %s118 = sphi 0, %s116
      %s119 = sphi 0, %s118
      %s133 = sphi 0, %s119
      %s137 = sphi 0, %s137
      %s139 = sphi 0, %s137
      %s140 = sphi 0, %s139
      %s154 = sphi 0, %s140
      %s158 = sphi 0, %s158
      %s160 = sphi 0, %s158
      %s161 = sphi 0, %s160
      %s175 = sphi 0, %s161
      %s183 = sphi 0, %s185
      %s186 = sphi 0, %s183
      %s187 = sphi 0, %s186
      %s203 = sphi 0, %s187
    $region4: #{tpu_custom_call.1} parent=1 // loop_header_branch
      %22 = sbr.rel (%p20) target = $region8
    $region5: #{tpu_custom_call.1} parent=1 // loop_body
      %s24 = ssub.s32 %s19, 1
      %s25 = ssub.s32 %s19, 2
      %s32 = sadd.s32 1, %s27
      %p33 = scmp.ge.s32.totalorder %s32, 1
      %s34 = scalar_select %p33, 0, %s32
      %s35 = sadd.s32 1, %s26
      %s36 = scalar_select %p33, %s35, %s26
      %p37 = scmp.ge.s32.totalorder %s36, 2
      %s38 = scalar_select %p37, 0, %s36
      %s39 = ssub.s32 %s26, %s38
      %s40 = ssub.s32 %s27, %s34
      %s41 = sor.u32 %s39, %s40
      %p42 = scmp.eq.s32.totalorder %s41, 0
      %s44 = sadd.s32 %s43, 1
      %s45 = scalar_select %p42, %s43, %s44
      %p48 = pneg %p42
      %p49 = scmp.eq.s32.totalorder %s19, 1
      %p50 = por %p48, %p49
      %p51 = scmp.ne.s32.totalorder %s43, %s46
      %p52 = scmp.eq.s32.totalorder %s19, 0
      %p53 = por %p51, %p52
      %p54 = scmp.ne.s32.totalorder %s43, %s46
      %p55 = scmp.eq.s32.totalorder %s24, 1
      %p56 = por %p54, %p55
      %p57 = scmp.ne.s32.totalorder %s46, %s47
      %p58 = scmp.eq.s32.totalorder %s24, 0
      %p59 = por %p57, %p58
      %p60 = scmp.ne.s32.totalorder %s46, %s47
      %p61 = scmp.eq.s32.totalorder %s25, 1
      %p62 = por %p60, %p61
      %p64 = scmp.ne.s32.totalorder %s47, %s63
      %p65 = scmp.eq.s32.totalorder %s25, 0
      %p66 = por %p64, %p65
      %s67 = ssub.s32 %s26, %s38
      %s68 = ssub.s32 %s27, %s34
      %s69 = sor.u32 %s67, %s68
      %p70 = scmp.eq.s32.totalorder %s69, 0
      %s72 = sadd.s32 %s71, 1
      %s73 = scalar_select %p70, %s71, %s72
      %p76 = pneg %p70
      %p77 = scmp.eq.s32.totalorder %s19, 1
      %p78 = por %p76, %p77
      %p79 = scmp.ne.s32.totalorder %s71, %s74
      %p80 = scmp.eq.s32.totalorder %s19, 0
      %p81 = por %p79, %p80
      %p82 = scmp.ne.s32.totalorder %s71, %s74
      %p83 = scmp.eq.s32.totalorder %s24, 1
      %p84 = por %p82, %p83
      %p85 = scmp.ne.s32.totalorder %s74, %s75
      %p86 = scmp.eq.s32.totalorder %s24, 0
      %p87 = por %p85, %p86
      %p88 = scmp.ne.s32.totalorder %s74, %s75
      %p89 = scmp.eq.s32.totalorder %s25, 1
      %p90 = por %p88, %p89
      %p92 = scmp.ne.s32.totalorder %s75, %s91
      %p93 = scmp.eq.s32.totalorder %s25, 0
      %p94 = por %p92, %p93
      %s96 = sadd.s32 %s95, 1
      %p99 = scmp.eq.s32.totalorder %s19, 1
      %p100 = scmp.ne.s32.totalorder %s95, %s97
      %p101 = scmp.eq.s32.totalorder %s19, 0
      %p102 = por %p100, %p101
      %p103 = scmp.ne.s32.totalorder %s95, %s97
      %p104 = scmp.eq.s32.totalorder %s24, 1
      %p105 = por %p103, %p104
      %p106 = scmp.ne.s32.totalorder %s97, %s98
      %p107 = scmp.eq.s32.totalorder %s24, 0
      %p108 = por %p106, %p107
      %p109 = scmp.ne.s32.totalorder %s97, %s98
      %p110 = scmp.eq.s32.totalorder %s25, 1
      %p111 = por %p109, %p110
      %p113 = scmp.ne.s32.totalorder %s98, %s112
      %p114 = scmp.eq.s32.totalorder %s25, 0
      %p115 = por %p113, %p114
      %s117 = sadd.s32 %s116, 1
      %p120 = scmp.eq.s32.totalorder %s19, 1
      %p121 = scmp.ne.s32.totalorder %s116, %s118
      %p122 = scmp.eq.s32.totalorder %s19, 0
      %p123 = por %p121, %p122
      %p124 = scmp.ne.s32.totalorder %s116, %s118
      %p125 = scmp.eq.s32.totalorder %s24, 1
      %p126 = por %p124, %p125
      %p127 = scmp.ne.s32.totalorder %s118, %s119
      %p128 = scmp.eq.s32.totalorder %s24, 0
      %p129 = por %p127, %p128
      %p130 = scmp.ne.s32.totalorder %s118, %s119
      %p131 = scmp.eq.s32.totalorder %s25, 1
      %p132 = por %p130, %p131
      %p134 = scmp.ne.s32.totalorder %s119, %s133
      %p135 = scmp.eq.s32.totalorder %s25, 0
      %p136 = por %p134, %p135
      %s138 = sadd.s32 %s137, 1
      %p141 = scmp.eq.s32.totalorder %s19, 1
      %p142 = scmp.ne.s32.totalorder %s137, %s139
      %p143 = scmp.eq.s32.totalorder %s19, 0
      %p144 = por %p142, %p143
      %p145 = scmp.ne.s32.totalorder %s137, %s139
      %p146 = scmp.eq.s32.totalorder %s24, 1
      %p147 = por %p145, %p146
      %p148 = scmp.ne.s32.totalorder %s139, %s140
      %p149 = scmp.eq.s32.totalorder %s24, 0
      %p150 = por %p148, %p149
      %p151 = scmp.ne.s32.totalorder %s139, %s140
      %p152 = scmp.eq.s32.totalorder %s25, 1
      %p153 = por %p151, %p152
      %p155 = scmp.ne.s32.totalorder %s140, %s154
      %p156 = scmp.eq.s32.totalorder %s25, 0
      %p157 = por %p155, %p156
      %s159 = sadd.s32 %s158, 1
      %p162 = scmp.eq.s32.totalorder %s19, 1
      %p163 = scmp.ne.s32.totalorder %s158, %s160
      %p164 = scmp.eq.s32.totalorder %s19, 0
      %p165 = por %p163, %p164
      %p166 = scmp.ne.s32.totalorder %s158, %s160
      %p167 = scmp.eq.s32.totalorder %s24, 1
      %p168 = por %p166, %p167
      %p169 = scmp.ne.s32.totalorder %s160, %s161
      %p170 = scmp.eq.s32.totalorder %s24, 0
      %p171 = por %p169, %p170
      %p172 = scmp.ne.s32.totalorder %s160, %s161
      %p173 = scmp.eq.s32.totalorder %s25, 1
      %p174 = por %p172, %p173
      %p176 = scmp.ne.s32.totalorder %s161, %s175
      %p177 = scmp.eq.s32.totalorder %s25, 0
      %p178 = por %p176, %p177
      %s179 = ssub.s32 %s26, %s38
      %s180 = ssub.s32 %s27, %s34
      %s181 = sor.u32 %s179, %s180
      %p182 = scmp.eq.s32.totalorder %s181, 0
      %s184 = sadd.s32 %s183, 1
      %s185 = scalar_select %p182, %s183, %s184
      %p188 = pneg %p182
      %p189 = scmp.eq.s32.totalorder %s19, 1
      %p190 = por %p188, %p189
      %p191 = scmp.ne.s32.totalorder %s183, %s186
      %p192 = scmp.eq.s32.totalorder %s19, 0
      %p193 = por %p191, %p192
      %p194 = scmp.ne.s32.totalorder %s183, %s186
      %p195 = scmp.eq.s32.totalorder %s24, 1
      %p196 = por %p194, %p195
      %p197 = scmp.ne.s32.totalorder %s186, %s187
      %p198 = scmp.eq.s32.totalorder %s24, 0
      %p199 = por %p197, %p198
      %p200 = scmp.ne.s32.totalorder %s186, %s187
      %p201 = scmp.eq.s32.totalorder %s25, 1
      %p202 = por %p200, %p201
      %p204 = scmp.ne.s32.totalorder %s187, %s203
      %p205 = scmp.eq.s32.totalorder %s25, 0
      %p206 = por %p204, %p205
      %p207 = scmp.le.s32.totalorder 1, %s19
      %p208 = scmp.lt.s32.totalorder %s19, 3
      %p209 = pnand %p207, %p208
      %p210 = pneg %p209
      // Predicated region
      $region9: #{tpu_custom_call.1} parent=5 // pred_check
        _
      $region10: #{tpu_custom_call.1} parent=5 // pred_check_branch
        %212 = sbr.rel (%p209) target = $region12
      $region11: #{tpu_custom_call.1} parent=5 // pred_region
        %s213 = ssub.s32 %s19, 1
        // Predicated region
        $region13: #{tpu_custom_call.1} parent=11 // pred_check
          %p214 = pneg %p108
        $region14: #{tpu_custom_call.1} parent=11 // pred_check_branch
          %216 = sbr.rel (%p214) target = $region16
        $region15: #{tpu_custom_call.1} parent=11 // pred_region
          _
        $region16: #{tpu_custom_call.1} parent=11 // pred_fallthru
          _
        // Predicated region
        $region17: #{tpu_custom_call.1} parent=11 // pred_check
          %p217 = pneg %p129
        $region18: #{tpu_custom_call.1} parent=11 // pred_check_branch
          %219 = sbr.rel (%p217) target = $region20
        $region19: #{tpu_custom_call.1} parent=11 // pred_region
          _
        $region20: #{tpu_custom_call.1} parent=11 // pred_fallthru
          _
        // Predicated region
        $region21: #{tpu_custom_call.1} parent=11 // pred_check
          %p220 = pneg %p150
        $region22: #{tpu_custom_call.1} parent=11 // pred_check_branch
          %222 = sbr.rel (%p220) target = $region24
        $region23: #{tpu_custom_call.1} parent=11 // pred_region
          %s224 = ssub.s32 128, 128
          %225 = vsyncadd [#allocation6], %s224
          %s227 = sshll.u32 [#allocation5], 4
          %s228 = int_to_ptr.vmem [resolvable:$true] %s227
          %230 = dma.hbm_to_vmem [thread:$0]  %s4, 128, %s228, [#allocation6]
        $region24: #{tpu_custom_call.1} parent=11 // pred_fallthru
          _
        // Predicated region
        $region25: #{tpu_custom_call.1} parent=11 // pred_check
          %p231 = pneg %p171
        $region26: #{tpu_custom_call.1} parent=11 // pred_check_branch
          %233 = sbr.rel (%p231) target = $region28
        $region27: #{tpu_custom_call.1} parent=11 // pred_region
          _
        $region28: #{tpu_custom_call.1} parent=11 // pred_fallthru
          _
      $region12: #{tpu_custom_call.1} parent=5 // pred_fallthru
        _
      %p234 = scmp.lt.s32.totalorder %s19, 2
      // Predicated region
      $region29: #{tpu_custom_call.1} parent=5 // pred_check
        %p235 = pneg %p234
      $region30: #{tpu_custom_call.1} parent=5 // pred_check_branch
        %237 = sbr.rel (%p235) target = $region32
      $region31: #{tpu_custom_call.1} parent=5 // pred_region
        // Predicated region
        $region33: #{tpu_custom_call.1} parent=31 // pred_check
          %p238 = pneg %p53
        $region34: #{tpu_custom_call.1} parent=31 // pred_check_branch
          %240 = sbr.rel (%p238) target = $region36
        $region35: #{tpu_custom_call.1} parent=31 // pred_region
          %s241 = smul.u32 2, %s27
          %p242 = scmp.lt.s32.totalorder %s26, 1
          %s243 = scalar_select %p242, %s26, 1
          %p244 = scmp.lt.s32.totalorder %s241, 1
          %s245 = scalar_select %p244, %s241, 1
          %s246 = smul.addr %s243, 2
          %s247 = sadd.s32 %s245, %s246
          %s248 = smul.addr %s247, 4
          %s249 = scalar_lea.vmem %s0, %s248
          %s250 = smul.u32 2, %s27
        $region36: #{tpu_custom_call.1} parent=31 // pred_fallthru
          _
        // Predicated region
        $region37: #{tpu_custom_call.1} parent=31 // pred_check
          %p251 = pneg %p81
        $region38: #{tpu_custom_call.1} parent=31 // pred_check_branch
          %253 = sbr.rel (%p251) target = $region40
        $region39: #{tpu_custom_call.1} parent=31 // pred_region
          %s254 = sand.u32 %s71, 1
          %s255 = scalar_lea.sflag [#allocation3], %s254
          %s256 = sand.u32 %s71, 1
          %s257 = smul.addr %s256, 8
          %s258 = scalar_lea.vmem [#allocation2], %s257
          %s260 = ssub.s32 128, 128
          %261 = vsyncadd %s255, %s260
          %s262 = sadd.s32 %s27, %s26
          %s263 = smul.addr %s262, 128
          %s264 = scalar_lea.hbm %s1, %s263
          %s266 = sshll.u32 %s258, 4
          %s267 = int_to_ptr.vmem [resolvable:$true] %s266
          %269 = dma.hbm_to_vmem [thread:$0]  %s264, 128, %s267, %s255
        $region40: #{tpu_custom_call.1} parent=31 // pred_fallthru
          _
      $region32: #{tpu_custom_call.1} parent=5 // pred_fallthru
        _
      %p270 = scmp.le.s32.totalorder 1, %s19
      %p271 = scmp.lt.s32.totalorder %s19, 3
      %p272 = pnand %p270, %p271
      %p273 = pneg %p272
      // Predicated region
      $region41: #{tpu_custom_call.1} parent=5 // pred_check
        _
      $region42: #{tpu_custom_call.1} parent=5 // pred_check_branch
        %275 = sbr.rel (%p272) target = $region44
      $region43: #{tpu_custom_call.1} parent=5 // pred_region
        %s276 = ssub.s32 %s19, 1
        %s277 = sand.u32 %s74, 1
        %s278 = scalar_lea.sflag [#allocation3], %s277
        %s279 = sand.u32 %s74, 1
        %s280 = smul.addr %s279, 8
        %s281 = scalar_lea.vmem [#allocation2], %s280
        // Predicated region
        $region45: #{tpu_custom_call.1} parent=43 // pred_check
          %p282 = pneg %p87
        $region46: #{tpu_custom_call.1} parent=43 // pred_check_branch
          %284 = sbr.rel (%p282) target = $region48
        $region47: #{tpu_custom_call.1} parent=43 // pred_region
          %285 = dma.done %s278, 128
        $region48: #{tpu_custom_call.1} parent=43 // pred_fallthru
          _
        // Predicated region
        $region49: #{tpu_custom_call.1} parent=43 // pred_check
          %p286 = pneg %p150
        $region50: #{tpu_custom_call.1} parent=43 // pred_check_branch
          %288 = sbr.rel (%p286) target = $region52
        $region51: #{tpu_custom_call.1} parent=43 // pred_region
          %289 = dma.done [#allocation6], 128
        $region52: #{tpu_custom_call.1} parent=43 // pred_fallthru
          _
        %s290 = smul.u32 2, %s29
        %p291 = scmp.lt.s32.totalorder %s28, 1
        %s292 = scalar_select %p291, %s28, 1
        %p293 = scmp.lt.s32.totalorder %s290, 1
        %s294 = scalar_select %p293, %s290, 1
        %s295 = smul.addr %s292, 2
        %s296 = sadd.s32 %s294, %s295
        %s297 = smul.addr %s296, 4
        %s298 = scalar_lea.vmem %s0, %s297
        %p299 = pneg %p59
        %p300 = pneg %p56
        %s301 = sand.u32 %s74, 1
        %s302 = scalar_lea.sflag [#allocation3], %s301
        %s303 = sand.u32 %s74, 1
        %s304 = smul.addr %s303, 8
        %s305 = scalar_lea.vmem [#allocation2], %s304
        %p306 = pneg %p87
        %p307 = pneg %p84
        %p308 = pneg %p108
        %p309 = pneg %p105
        %p310 = pneg %p129
        %p311 = pneg %p126
        %p312 = pneg %p150
        %p313 = pneg %p147
        %p314 = pneg %p171
        %p315 = pneg %p168
        %p316 = pneg %p199
        %p317 = pneg %p196
        %s318 = sand.u32 %s186, 1
        %s319 = scalar_lea.sflag [#allocation4], %s318
        %s320 = sand.u32 %s186, 1
        %s321 = smul.addr %s320, 16
        %s322 = scalar_lea.vmem [#allocation7], %s321
        %s323 = smul.u32 2, %s29
        %p324 = scmp.lt.s32.totalorder %s28, 1
        %s325 = scalar_select %p324, %s28, 1
        %p326 = scmp.lt.s32.totalorder %s323, 1
        %s327 = scalar_select %p326, %s323, 1
        %s328 = smul.addr %s325, 2
        %s329 = sadd.s32 %s327, %s328
        %s330 = smul.addr %s329, 4
        %s331 = scalar_lea.vmem %s0, %s330
        %s332 = smul.u32 2, %s29
        %s333 = smul.u32 2, %s29
        %v334 = vld [vmem:[%s331] sm:$0xff]
        %v335 = vld [vmem:[%s281] sm:$0xff]
        %v336 = vld [vmem:[%s2] sm:$0xff]
        %v337 = vld [vmem:[%s3] sm:$0xff]
        %vm338 = vcmask 64512
        %v340 = vsel %vm338, %v337, 0
        %342 = vmatprep.subr.mxu0 0.0
        %343 = vmatpush1.msra.mxu0 0.0
        %344 = vmatprep.subr.mxu0 0.0
        %345 = vmatpush1.msra.mxu0 0.0
        %346 = vmatprep.subr.mxu0 0.0
        %347 = vmatpush1.msra.mxu0 0.0
        %348 = vmatprep.subr.mxu0 0.0
        %349 = vmatpush1.msra.mxu0 0.0
        %350 = vmatprep.subr.mxu0 0.0
        %351 = vmatpush1.msra.mxu0 0.0
        %352 = vmatprep.subr.mxu0 0.0
        %353 = vmatpush1.msra.mxu0 0.0
        %354 = vmatprep.subr.mxu0 0.0
        %355 = vmatpush1.msra.mxu0 0.0
        %356 = vmatprep.subr.mxu0 0.0
        %357 = vmatpush1.msra.mxu0 0.0
        %358 = vmatprep.subr.mxu0 0.0
        %359 = vmatpush1.msra.mxu0 0.0
        %360 = vmatprep.subr.mxu0 0.0
        %361 = vmatpush1.msra.mxu0 0.0
        %362 = vmatprep.subr.mxu0 0.0
        %363 = vmatpush1.msra.mxu0 0.0
        %364 = vmatprep.subr.mxu0 0.0
        %365 = vmatpush1.msra.mxu0 0.0
        %366 = vmatprep.subr.mxu0 0.0
        %367 = vmatpush1.msra.mxu0 0.0
        %368 = vmatprep.subr.mxu0 0.0
        %369 = vmatpush1.msra.mxu0 0.0
        %370 = vmatprep.subr.mxu0 0.0
        %371 = vmatpush1.msra.mxu0 0.0
        %372 = vmatprep.subr.mxu0 0.0
        %373 = vmatpush1.msra.mxu0 %v335
        %374 = vmatprep.subr.mxu0 0.0
        %375 = vmatpush2.msra.mxu0 0.0
        %376 = vmatprep.subr.mxu0 0.0
        %377 = vmatpush2.msra.mxu0 0.0
        %378 = vmatprep.subr.mxu0 0.0
        %379 = vmatpush2.msra.mxu0 0.0
        %380 = vmatprep.subr.mxu0 0.0
        %381 = vmatpush2.msra.mxu0 0.0
        %382 = vmatprep.subr.mxu0 0.0
        %383 = vmatpush2.msra.mxu0 0.0
        %384 = vmatprep.subr.mxu0 0.0
        %385 = vmatpush2.msra.mxu0 0.0
        %386 = vmatprep.subr.mxu0 0.0
        %387 = vmatpush2.msra.mxu0 0.0
        %388 = vmatprep.subr.mxu0 0.0
        %389 = vmatpush2.msra.mxu0 0.0
        %390 = vmatprep.subr.mxu0 0.0
        %391 = vmatpush2.msra.mxu0 0.0
        %392 = vmatprep.subr.mxu0 0.0
        %393 = vmatpush2.msra.mxu0 0.0
        %394 = vmatprep.subr.mxu0 0.0
        %395 = vmatpush2.msra.mxu0 0.0
        %396 = vmatprep.subr.mxu0 0.0
        %397 = vmatpush2.msra.mxu0 0.0
        %398 = vmatprep.subr.mxu0 0.0
        %399 = vmatpush2.msra.mxu0 0.0
        %400 = vmatprep.subr.mxu0 0.0
        %401 = vmatpush2.msra.mxu0 0.0
        %402 = vmatprep.subr.mxu0 0.0
        %403 = vmatpush2.msra.mxu0 0.0
        %404 = vmatprep.subr.mxu0 0.0
        %405 = vmatpush2.msra.mxu0 0.0
        %406 = vmatprep.mubr.f32.mxu0 0.0
        %407 = vmatmul.mubr.f32.gmra.mxu0 %v340
        %v408 = vpop.f32.mrf.mxu0
        %v409 = vadd.f32 0.0, %v408
        %v410 = vpop.f32.mrf.mxu0
        %411 = vdwg.mxu0
        %v412 = vld [vmem:[#allocation5] sm:$0xff]
        %v414 = vsel %vm338, %v409, 0
        %416 = vmatprep.subr.mxu0 0.0
        %417 = vmatpush1.msra.mxu0 0.0
        %418 = vmatprep.subr.mxu0 0.0
        %419 = vmatpush1.msra.mxu0 0.0
        %420 = vmatprep.subr.mxu0 0.0
        %421 = vmatpush1.msra.mxu0 0.0
        %422 = vmatprep.subr.mxu0 0.0
        %423 = vmatpush1.msra.mxu0 0.0
        %424 = vmatprep.subr.mxu0 0.0
        %425 = vmatpush1.msra.mxu0 0.0
        %426 = vmatprep.subr.mxu0 0.0
        %427 = vmatpush1.msra.mxu0 0.0
        %428 = vmatprep.subr.mxu0 0.0
        %429 = vmatpush1.msra.mxu0 0.0
        %430 = vmatprep.subr.mxu0 0.0
        %431 = vmatpush1.msra.mxu0 0.0
        %432 = vmatprep.subr.mxu0 0.0
        %433 = vmatpush1.msra.mxu0 0.0
        %434 = vmatprep.subr.mxu0 0.0
        %435 = vmatpush1.msra.mxu0 0.0
        %436 = vmatprep.subr.mxu0 0.0
        %437 = vmatpush1.msra.mxu0 0.0
        %438 = vmatprep.subr.mxu0 0.0
        %439 = vmatpush1.msra.mxu0 0.0
        %440 = vmatprep.subr.mxu0 0.0
        %441 = vmatpush1.msra.mxu0 0.0
        %442 = vmatprep.subr.mxu0 0.0
        %443 = vmatpush1.msra.mxu0 0.0
        %444 = vmatprep.subr.mxu0 0.0
        %445 = vmatpush1.msra.mxu0 0.0
        %446 = vmatprep.subr.mxu0 0.0
        %447 = vmatpush1.msra.mxu0 %v412
        %448 = vmatprep.subr.mxu0 0.0
        %449 = vmatpush2.msra.mxu0 0.0
        %450 = vmatprep.subr.mxu0 0.0
        %451 = vmatpush2.msra.mxu0 0.0
        %452 = vmatprep.subr.mxu0 0.0
        %453 = vmatpush2.msra.mxu0 0.0
        %454 = vmatprep.subr.mxu0 0.0
        %455 = vmatpush2.msra.mxu0 0.0
        %456 = vmatprep.subr.mxu0 0.0
        %457 = vmatpush2.msra.mxu0 0.0
        %458 = vmatprep.subr.mxu0 0.0
        %459 = vmatpush2.msra.mxu0 0.0
        %460 = vmatprep.subr.mxu0 0.0
        %461 = vmatpush2.msra.mxu0 0.0
        %462 = vmatprep.subr.mxu0 0.0
        %463 = vmatpush2.msra.mxu0 0.0
        %464 = vmatprep.subr.mxu0 0.0
        %465 = vmatpush2.msra.mxu0 0.0
        %466 = vmatprep.subr.mxu0 0.0
        %467 = vmatpush2.msra.mxu0 0.0
        %468 = vmatprep.subr.mxu0 0.0
        %469 = vmatpush2.msra.mxu0 0.0
        %470 = vmatprep.subr.mxu0 0.0
        %471 = vmatpush2.msra.mxu0 0.0
        %472 = vmatprep.subr.mxu0 0.0
        %473 = vmatpush2.msra.mxu0 0.0
        %474 = vmatprep.subr.mxu0 0.0
        %475 = vmatpush2.msra.mxu0 0.0
        %476 = vmatprep.subr.mxu0 0.0
        %477 = vmatpush2.msra.mxu0 0.0
        %478 = vmatprep.subr.mxu0 0.0
        %479 = vmatpush2.msra.mxu0 0.0
        %480 = vmatprep.mubr.f32.mxu0 0.0
        %481 = vmatmul.mubr.f32.gmra.mxu0 %v414
        %v482 = vpop.f32.mrf.mxu0
        %v483 = vadd.f32 0.0, %v482
        %v484 = vpop.f32.mrf.mxu0
        %485 = vdwg.mxu0
        %486 = vrot.lane.b32.xlu0 %v409, 120
        %v487 = vpop.permute.xlu0 %486
        %v488 = vsel %vm338, %v487, 0
        %490 = vmatprep.subr.mxu0 0.0
        %491 = vmatpush1.msra.mxu0 0.0
        %492 = vmatprep.subr.mxu0 0.0
        %493 = vmatpush1.msra.mxu0 0.0
        %494 = vmatprep.subr.mxu0 0.0
        %495 = vmatpush1.msra.mxu0 0.0
        %496 = vmatprep.subr.mxu0 0.0
        %497 = vmatpush1.msra.mxu0 0.0
        %498 = vmatprep.subr.mxu0 0.0
        %499 = vmatpush1.msra.mxu0 0.0
        %500 = vmatprep.subr.mxu0 0.0
        %501 = vmatpush1.msra.mxu0 0.0
        %502 = vmatprep.subr.mxu0 0.0
        %503 = vmatpush1.msra.mxu0 0.0
        %504 = vmatprep.subr.mxu0 0.0
        %505 = vmatpush1.msra.mxu0 0.0
        %506 = vmatprep.subr.mxu0 0.0
        %507 = vmatpush1.msra.mxu0 0.0
        %508 = vmatprep.subr.mxu0 0.0
        %509 = vmatpush1.msra.mxu0 0.0
        %510 = vmatprep.subr.mxu0 0.0
        %511 = vmatpush1.msra.mxu0 0.0
        %512 = vmatprep.subr.mxu0 0.0
        %513 = vmatpush1.msra.mxu0 0.0
        %514 = vmatprep.subr.mxu0 0.0
        %515 = vmatpush1.msra.mxu0 0.0
        %516 = vmatprep.subr.mxu0 0.0
        %517 = vmatpush1.msra.mxu0 0.0
        %518 = vmatprep.subr.mxu0 0.0
        %519 = vmatpush1.msra.mxu0 0.0
        %520 = vmatprep.subr.mxu0 0.0
        %521 = vmatpush1.msra.mxu0 %v412
        %522 = vmatprep.subr.mxu0 0.0
        %523 = vmatpush2.msra.mxu0 0.0
        %524 = vmatprep.subr.mxu0 0.0
        %525 = vmatpush2.msra.mxu0 0.0
        %526 = vmatprep.subr.mxu0 0.0
        %527 = vmatpush2.msra.mxu0 0.0
        %528 = vmatprep.subr.mxu0 0.0
        %529 = vmatpush2.msra.mxu0 0.0
        %530 = vmatprep.subr.mxu0 0.0
        %531 = vmatpush2.msra.mxu0 0.0
        %532 = vmatprep.subr.mxu0 0.0
        %533 = vmatpush2.msra.mxu0 0.0
        %534 = vmatprep.subr.mxu0 0.0
        %535 = vmatpush2.msra.mxu0 0.0
        %536 = vmatprep.subr.mxu0 0.0
        %537 = vmatpush2.msra.mxu0 0.0
        %538 = vmatprep.subr.mxu0 0.0
        %539 = vmatpush2.msra.mxu0 0.0
        %540 = vmatprep.subr.mxu0 0.0
        %541 = vmatpush2.msra.mxu0 0.0
        %542 = vmatprep.subr.mxu0 0.0
        %543 = vmatpush2.msra.mxu0 0.0
        %544 = vmatprep.subr.mxu0 0.0
        %545 = vmatpush2.msra.mxu0 0.0
        %546 = vmatprep.subr.mxu0 0.0
        %547 = vmatpush2.msra.mxu0 0.0
        %548 = vmatprep.subr.mxu0 0.0
        %549 = vmatpush2.msra.mxu0 0.0
        %550 = vmatprep.subr.mxu0 0.0
        %551 = vmatpush2.msra.mxu0 0.0
        %552 = vmatprep.subr.mxu0 0.0
        %553 = vmatpush2.msra.mxu0 0.0
        %554 = vmatprep.mubr.f32.mxu0 0.0
        %555 = vmatmul.mubr.f32.gmra.mxu0 %v488
        %v556 = vpop.f32.mrf.mxu0
        %v557 = vadd.f32 0.0, %v556
        %v558 = vpop.f32.mrf.mxu0
        %559 = vdwg.mxu0
        %560 = vrot.lane.b32.xlu0 %v409, 112
        %v561 = vpop.permute.xlu0 %560
        %v562 = vsel %vm338, %v561, 0
        %564 = vmatprep.subr.mxu0 0.0
        %565 = vmatpush1.msra.mxu0 0.0
        %566 = vmatprep.subr.mxu0 0.0
        %567 = vmatpush1.msra.mxu0 0.0
        %568 = vmatprep.subr.mxu0 0.0
        %569 = vmatpush1.msra.mxu0 0.0
        %570 = vmatprep.subr.mxu0 0.0
        %571 = vmatpush1.msra.mxu0 0.0
        %572 = vmatprep.subr.mxu0 0.0
        %573 = vmatpush1.msra.mxu0 0.0
        %574 = vmatprep.subr.mxu0 0.0
        %575 = vmatpush1.msra.mxu0 0.0
        %576 = vmatprep.subr.mxu0 0.0
        %577 = vmatpush1.msra.mxu0 0.0
        %578 = vmatprep.subr.mxu0 0.0
        %579 = vmatpush1.msra.mxu0 0.0
        %580 = vmatprep.subr.mxu0 0.0
        %581 = vmatpush1.msra.mxu0 0.0
        %582 = vmatprep.subr.mxu0 0.0
        %583 = vmatpush1.msra.mxu0 0.0
        %584 = vmatprep.subr.mxu0 0.0
        %585 = vmatpush1.msra.mxu0 0.0
        %586 = vmatprep.subr.mxu0 0.0
        %587 = vmatpush1.msra.mxu0 0.0
        %588 = vmatprep.subr.mxu0 0.0
        %589 = vmatpush1.msra.mxu0 0.0
        %590 = vmatprep.subr.mxu0 0.0
        %591 = vmatpush1.msra.mxu0 0.0
        %592 = vmatprep.subr.mxu0 0.0
        %593 = vmatpush1.msra.mxu0 0.0
        %594 = vmatprep.subr.mxu0 0.0
        %595 = vmatpush1.msra.mxu0 %v412
        %596 = vmatprep.subr.mxu0 0.0
        %597 = vmatpush2.msra.mxu0 0.0
        %598 = vmatprep.subr.mxu0 0.0
        %599 = vmatpush2.msra.mxu0 0.0
        %600 = vmatprep.subr.mxu0 0.0
        %601 = vmatpush2.msra.mxu0 0.0
        %602 = vmatprep.subr.mxu0 0.0
        %603 = vmatpush2.msra.mxu0 0.0
        %604 = vmatprep.subr.mxu0 0.0
        %605 = vmatpush2.msra.mxu0 0.0
        %606 = vmatprep.subr.mxu0 0.0
        %607 = vmatpush2.msra.mxu0 0.0
        %608 = vmatprep.subr.mxu0 0.0
        %609 = vmatpush2.msra.mxu0 0.0
        %610 = vmatprep.subr.mxu0 0.0
        %611 = vmatpush2.msra.mxu0 0.0
        %612 = vmatprep.subr.mxu0 0.0
        %613 = vmatpush2.msra.mxu0 0.0
        %614 = vmatprep.subr.mxu0 0.0
        %615 = vmatpush2.msra.mxu0 0.0
        %616 = vmatprep.subr.mxu0 0.0
        %617 = vmatpush2.msra.mxu0 0.0
        %618 = vmatprep.subr.mxu0 0.0
        %619 = vmatpush2.msra.mxu0 0.0
        %620 = vmatprep.subr.mxu0 0.0
        %621 = vmatpush2.msra.mxu0 0.0
        %622 = vmatprep.subr.mxu0 0.0
        %623 = vmatpush2.msra.mxu0 0.0
        %624 = vmatprep.subr.mxu0 0.0
        %625 = vmatpush2.msra.mxu0 0.0
        %626 = vmatprep.subr.mxu0 0.0
        %627 = vmatpush2.msra.mxu0 0.0
        %628 = vmatprep.mubr.f32.mxu0 0.0
        %629 = vmatmul.mubr.f32.gmra.mxu0 %v562
        %v630 = vpop.f32.mrf.mxu0
        %v631 = vadd.f32 0.0, %v630
        %v632 = vpop.f32.mrf.mxu0
        %633 = vdwg.mxu0
        %634 = vrot.lane.b32.xlu0 %v409, 104
        %v635 = vpop.permute.xlu0 %634
        %v636 = vsel %vm338, %v635, 0
        %638 = vmatprep.subr.mxu0 0.0
        %639 = vmatpush1.msra.mxu0 0.0
        %640 = vmatprep.subr.mxu0 0.0
        %641 = vmatpush1.msra.mxu0 0.0
        %642 = vmatprep.subr.mxu0 0.0
        %643 = vmatpush1.msra.mxu0 0.0
        %644 = vmatprep.subr.mxu0 0.0
        %645 = vmatpush1.msra.mxu0 0.0
        %646 = vmatprep.subr.mxu0 0.0
        %647 = vmatpush1.msra.mxu0 0.0
        %648 = vmatprep.subr.mxu0 0.0
        %649 = vmatpush1.msra.mxu0 0.0
        %650 = vmatprep.subr.mxu0 0.0
        %651 = vmatpush1.msra.mxu0 0.0
        %652 = vmatprep.subr.mxu0 0.0
        %653 = vmatpush1.msra.mxu0 0.0
        %654 = vmatprep.subr.mxu0 0.0
        %655 = vmatpush1.msra.mxu0 0.0
        %656 = vmatprep.subr.mxu0 0.0
        %657 = vmatpush1.msra.mxu0 0.0
        %658 = vmatprep.subr.mxu0 0.0
        %659 = vmatpush1.msra.mxu0 0.0
        %660 = vmatprep.subr.mxu0 0.0
        %661 = vmatpush1.msra.mxu0 0.0
        %662 = vmatprep.subr.mxu0 0.0
        %663 = vmatpush1.msra.mxu0 0.0
        %664 = vmatprep.subr.mxu0 0.0
        %665 = vmatpush1.msra.mxu0 0.0
        %666 = vmatprep.subr.mxu0 0.0
        %667 = vmatpush1.msra.mxu0 0.0
        %668 = vmatprep.subr.mxu0 0.0
        %669 = vmatpush1.msra.mxu0 %v412
        %670 = vmatprep.subr.mxu0 0.0
        %671 = vmatpush2.msra.mxu0 0.0
        %672 = vmatprep.subr.mxu0 0.0
        %673 = vmatpush2.msra.mxu0 0.0
        %674 = vmatprep.subr.mxu0 0.0
        %675 = vmatpush2.msra.mxu0 0.0
        %676 = vmatprep.subr.mxu0 0.0
        %677 = vmatpush2.msra.mxu0 0.0
        %678 = vmatprep.subr.mxu0 0.0
        %679 = vmatpush2.msra.mxu0 0.0
        %680 = vmatprep.subr.mxu0 0.0
        %681 = vmatpush2.msra.mxu0 0.0
        %682 = vmatprep.subr.mxu0 0.0
        %683 = vmatpush2.msra.mxu0 0.0
        %684 = vmatprep.subr.mxu0 0.0
        %685 = vmatpush2.msra.mxu0 0.0
        %686 = vmatprep.subr.mxu0 0.0
        %687 = vmatpush2.msra.mxu0 0.0
        %688 = vmatprep.subr.mxu0 0.0
        %689 = vmatpush2.msra.mxu0 0.0
        %690 = vmatprep.subr.mxu0 0.0
        %691 = vmatpush2.msra.mxu0 0.0
        %692 = vmatprep.subr.mxu0 0.0
        %693 = vmatpush2.msra.mxu0 0.0
        %694 = vmatprep.subr.mxu0 0.0
        %695 = vmatpush2.msra.mxu0 0.0
        %696 = vmatprep.subr.mxu0 0.0
        %697 = vmatpush2.msra.mxu0 0.0
        %698 = vmatprep.subr.mxu0 0.0
        %699 = vmatpush2.msra.mxu0 0.0
        %700 = vmatprep.subr.mxu0 0.0
        %701 = vmatpush2.msra.mxu0 0.0
        %702 = vmatprep.mubr.f32.mxu0 0.0
        %703 = vmatmul.mubr.f32.gmra.mxu0 %v636
        %v704 = vpop.f32.mrf.mxu0
        %v705 = vadd.f32 0.0, %v704
        %v706 = vpop.f32.mrf.mxu0
        %707 = vdwg.mxu0
        %708 = vrot.lane.b32.xlu0 %v409, 96
        %v709 = vpop.permute.xlu0 %708
        %v710 = vsel %vm338, %v709, 0
        %712 = vmatprep.subr.mxu0 0.0
        %713 = vmatpush1.msra.mxu0 0.0
        %714 = vmatprep.subr.mxu0 0.0
        %715 = vmatpush1.msra.mxu0 0.0
        %716 = vmatprep.subr.mxu0 0.0
        %717 = vmatpush1.msra.mxu0 0.0
        %718 = vmatprep.subr.mxu0 0.0
        %719 = vmatpush1.msra.mxu0 0.0
        %720 = vmatprep.subr.mxu0 0.0
        %721 = vmatpush1.msra.mxu0 0.0
        %722 = vmatprep.subr.mxu0 0.0
        %723 = vmatpush1.msra.mxu0 0.0
        %724 = vmatprep.subr.mxu0 0.0
        %725 = vmatpush1.msra.mxu0 0.0
        %726 = vmatprep.subr.mxu0 0.0
        %727 = vmatpush1.msra.mxu0 0.0
        %728 = vmatprep.subr.mxu0 0.0
        %729 = vmatpush1.msra.mxu0 0.0
        %730 = vmatprep.subr.mxu0 0.0
        %731 = vmatpush1.msra.mxu0 0.0
        %732 = vmatprep.subr.mxu0 0.0
        %733 = vmatpush1.msra.mxu0 0.0
        %734 = vmatprep.subr.mxu0 0.0
        %735 = vmatpush1.msra.mxu0 0.0
        %736 = vmatprep.subr.mxu0 0.0
        %737 = vmatpush1.msra.mxu0 0.0
        %738 = vmatprep.subr.mxu0 0.0
        %739 = vmatpush1.msra.mxu0 0.0
        %740 = vmatprep.subr.mxu0 0.0
        %741 = vmatpush1.msra.mxu0 0.0
        %742 = vmatprep.subr.mxu0 0.0
        %743 = vmatpush1.msra.mxu0 %v412
        %744 = vmatprep.subr.mxu0 0.0
        %745 = vmatpush2.msra.mxu0 0.0
        %746 = vmatprep.subr.mxu0 0.0
        %747 = vmatpush2.msra.mxu0 0.0
        %748 = vmatprep.subr.mxu0 0.0
        %749 = vmatpush2.msra.mxu0 0.0
        %750 = vmatprep.subr.mxu0 0.0
        %751 = vmatpush2.msra.mxu0 0.0
        %752 = vmatprep.subr.mxu0 0.0
        %753 = vmatpush2.msra.mxu0 0.0
        %754 = vmatprep.subr.mxu0 0.0
        %755 = vmatpush2.msra.mxu0 0.0
        %756 = vmatprep.subr.mxu0 0.0
        %757 = vmatpush2.msra.mxu0 0.0
        %758 = vmatprep.subr.mxu0 0.0
        %759 = vmatpush2.msra.mxu0 0.0
        %760 = vmatprep.subr.mxu0 0.0
        %761 = vmatpush2.msra.mxu0 0.0
        %762 = vmatprep.subr.mxu0 0.0
        %763 = vmatpush2.msra.mxu0 0.0
        %764 = vmatprep.subr.mxu0 0.0
        %765 = vmatpush2.msra.mxu0 0.0
        %766 = vmatprep.subr.mxu0 0.0
        %767 = vmatpush2.msra.mxu0 0.0
        %768 = vmatprep.subr.mxu0 0.0
        %769 = vmatpush2.msra.mxu0 0.0
        %770 = vmatprep.subr.mxu0 0.0
        %771 = vmatpush2.msra.mxu0 0.0
        %772 = vmatprep.subr.mxu0 0.0
        %773 = vmatpush2.msra.mxu0 0.0
        %774 = vmatprep.subr.mxu0 0.0
        %775 = vmatpush2.msra.mxu0 0.0
        %776 = vmatprep.mubr.f32.mxu0 0.0
        %777 = vmatmul.mubr.f32.gmra.mxu0 %v710
        %v778 = vpop.f32.mrf.mxu0
        %v779 = vadd.f32 0.0, %v778
        %v780 = vpop.f32.mrf.mxu0
        %781 = vdwg.mxu0
        %782 = vrot.lane.b32.xlu0 %v409, 88
        %v783 = vpop.permute.xlu0 %782
        %v784 = vsel %vm338, %v783, 0
        %786 = vmatprep.subr.mxu0 0.0
        %787 = vmatpush1.msra.mxu0 0.0
        %788 = vmatprep.subr.mxu0 0.0
        %789 = vmatpush1.msra.mxu0 0.0
        %790 = vmatprep.subr.mxu0 0.0
        %791 = vmatpush1.msra.mxu0 0.0
        %792 = vmatprep.subr.mxu0 0.0
        %793 = vmatpush1.msra.mxu0 0.0
        %794 = vmatprep.subr.mxu0 0.0
        %795 = vmatpush1.msra.mxu0 0.0
        %796 = vmatprep.subr.mxu0 0.0
        %797 = vmatpush1.msra.mxu0 0.0
        %798 = vmatprep.subr.mxu0 0.0
        %799 = vmatpush1.msra.mxu0 0.0
        %800 = vmatprep.subr.mxu0 0.0
        %801 = vmatpush1.msra.mxu0 0.0
        %802 = vmatprep.subr.mxu0 0.0
        %803 = vmatpush1.msra.mxu0 0.0
        %804 = vmatprep.subr.mxu0 0.0
        %805 = vmatpush1.msra.mxu0 0.0
        %806 = vmatprep.subr.mxu0 0.0
        %807 = vmatpush1.msra.mxu0 0.0
        %808 = vmatprep.subr.mxu0 0.0
        %809 = vmatpush1.msra.mxu0 0.0
        %810 = vmatprep.subr.mxu0 0.0
        %811 = vmatpush1.msra.mxu0 0.0
        %812 = vmatprep.subr.mxu0 0.0
        %813 = vmatpush1.msra.mxu0 0.0
        %814 = vmatprep.subr.mxu0 0.0
        %815 = vmatpush1.msra.mxu0 0.0
        %816 = vmatprep.subr.mxu0 0.0
        %817 = vmatpush1.msra.mxu0 %v412
        %818 = vmatprep.subr.mxu0 0.0
        %819 = vmatpush2.msra.mxu0 0.0
        %820 = vmatprep.subr.mxu0 0.0
        %821 = vmatpush2.msra.mxu0 0.0
        %822 = vmatprep.subr.mxu0 0.0
        %823 = vmatpush2.msra.mxu0 0.0
        %824 = vmatprep.subr.mxu0 0.0
        %825 = vmatpush2.msra.mxu0 0.0
        %826 = vmatprep.subr.mxu0 0.0
        %827 = vmatpush2.msra.mxu0 0.0
        %828 = vmatprep.subr.mxu0 0.0
        %829 = vmatpush2.msra.mxu0 0.0
        %830 = vmatprep.subr.mxu0 0.0
        %831 = vmatpush2.msra.mxu0 0.0
        %832 = vmatprep.subr.mxu0 0.0
        %833 = vmatpush2.msra.mxu0 0.0
        %834 = vmatprep.subr.mxu0 0.0
        %835 = vmatpush2.msra.mxu0 0.0
        %836 = vmatprep.subr.mxu0 0.0
        %837 = vmatpush2.msra.mxu0 0.0
        %838 = vmatprep.subr.mxu0 0.0
        %839 = vmatpush2.msra.mxu0 0.0
        %840 = vmatprep.subr.mxu0 0.0
        %841 = vmatpush2.msra.mxu0 0.0
        %842 = vmatprep.subr.mxu0 0.0
        %843 = vmatpush2.msra.mxu0 0.0
        %844 = vmatprep.subr.mxu0 0.0
        %845 = vmatpush2.msra.mxu0 0.0
        %846 = vmatprep.subr.mxu0 0.0
        %847 = vmatpush2.msra.mxu0 0.0
        %848 = vmatprep.subr.mxu0 0.0
        %849 = vmatpush2.msra.mxu0 0.0
        %850 = vmatprep.mubr.f32.mxu0 0.0
        %851 = vmatmul.mubr.f32.gmra.mxu0 %v784
        %v852 = vpop.f32.mrf.mxu0
        %v853 = vadd.f32 0.0, %v852
        %v854 = vpop.f32.mrf.mxu0
        %855 = vdwg.mxu0
        %856 = vrot.lane.b32.xlu0 %v409, 80
        %v857 = vpop.permute.xlu0 %856
        %v858 = vsel %vm338, %v857, 0
        %860 = vmatprep.subr.mxu0 0.0
        %861 = vmatpush1.msra.mxu0 0.0
        %862 = vmatprep.subr.mxu0 0.0
        %863 = vmatpush1.msra.mxu0 0.0
        %864 = vmatprep.subr.mxu0 0.0
        %865 = vmatpush1.msra.mxu0 0.0
        %866 = vmatprep.subr.mxu0 0.0
        %867 = vmatpush1.msra.mxu0 0.0
        %868 = vmatprep.subr.mxu0 0.0
        %869 = vmatpush1.msra.mxu0 0.0
        %870 = vmatprep.subr.mxu0 0.0
        %871 = vmatpush1.msra.mxu0 0.0
        %872 = vmatprep.subr.mxu0 0.0
        %873 = vmatpush1.msra.mxu0 0.0
        %874 = vmatprep.subr.mxu0 0.0
        %875 = vmatpush1.msra.mxu0 0.0
        %876 = vmatprep.subr.mxu0 0.0
        %877 = vmatpush1.msra.mxu0 0.0
        %878 = vmatprep.subr.mxu0 0.0
        %879 = vmatpush1.msra.mxu0 0.0
        %880 = vmatprep.subr.mxu0 0.0
        %881 = vmatpush1.msra.mxu0 0.0
        %882 = vmatprep.subr.mxu0 0.0
        %883 = vmatpush1.msra.mxu0 0.0
        %884 = vmatprep.subr.mxu0 0.0
        %885 = vmatpush1.msra.mxu0 0.0
        %886 = vmatprep.subr.mxu0 0.0
        %887 = vmatpush1.msra.mxu0 0.0
        %888 = vmatprep.subr.mxu0 0.0
        %889 = vmatpush1.msra.mxu0 0.0
        %890 = vmatprep.subr.mxu0 0.0
        %891 = vmatpush1.msra.mxu0 %v412
        %892 = vmatprep.subr.mxu0 0.0
        %893 = vmatpush2.msra.mxu0 0.0
        %894 = vmatprep.subr.mxu0 0.0
        %895 = vmatpush2.msra.mxu0 0.0
        %896 = vmatprep.subr.mxu0 0.0
        %897 = vmatpush2.msra.mxu0 0.0
        %898 = vmatprep.subr.mxu0 0.0
        %899 = vmatpush2.msra.mxu0 0.0
        %900 = vmatprep.subr.mxu0 0.0
        %901 = vmatpush2.msra.mxu0 0.0
        %902 = vmatprep.subr.mxu0 0.0
        %903 = vmatpush2.msra.mxu0 0.0
        %904 = vmatprep.subr.mxu0 0.0
        %905 = vmatpush2.msra.mxu0 0.0
        %906 = vmatprep.subr.mxu0 0.0
        %907 = vmatpush2.msra.mxu0 0.0
        %908 = vmatprep.subr.mxu0 0.0
        %909 = vmatpush2.msra.mxu0 0.0
        %910 = vmatprep.subr.mxu0 0.0
        %911 = vmatpush2.msra.mxu0 0.0
        %912 = vmatprep.subr.mxu0 0.0
        %913 = vmatpush2.msra.mxu0 0.0
        %914 = vmatprep.subr.mxu0 0.0
        %915 = vmatpush2.msra.mxu0 0.0
        %916 = vmatprep.subr.mxu0 0.0
        %917 = vmatpush2.msra.mxu0 0.0
        %918 = vmatprep.subr.mxu0 0.0
        %919 = vmatpush2.msra.mxu0 0.0
        %920 = vmatprep.subr.mxu0 0.0
        %921 = vmatpush2.msra.mxu0 0.0
        %922 = vmatprep.subr.mxu0 0.0
        %923 = vmatpush2.msra.mxu0 0.0
        %924 = vmatprep.mubr.f32.mxu0 0.0
        %925 = vmatmul.mubr.f32.gmra.mxu0 %v858
        %v926 = vpop.f32.mrf.mxu0
        %v927 = vadd.f32 0.0, %v926
        %v928 = vpop.f32.mrf.mxu0
        %929 = vdwg.mxu0
        %930 = vrot.lane.b32.xlu0 %v409, 72
        %v931 = vpop.permute.xlu0 %930
        %v932 = vsel %vm338, %v931, 0
        %934 = vmatprep.subr.mxu0 0.0
        %935 = vmatpush1.msra.mxu0 0.0
        %936 = vmatprep.subr.mxu0 0.0
        %937 = vmatpush1.msra.mxu0 0.0
        %938 = vmatprep.subr.mxu0 0.0
        %939 = vmatpush1.msra.mxu0 0.0
        %940 = vmatprep.subr.mxu0 0.0
        %941 = vmatpush1.msra.mxu0 0.0
        %942 = vmatprep.subr.mxu0 0.0
        %943 = vmatpush1.msra.mxu0 0.0
        %944 = vmatprep.subr.mxu0 0.0
        %945 = vmatpush1.msra.mxu0 0.0
        %946 = vmatprep.subr.mxu0 0.0
        %947 = vmatpush1.msra.mxu0 0.0
        %948 = vmatprep.subr.mxu0 0.0
        %949 = vmatpush1.msra.mxu0 0.0
        %950 = vmatprep.subr.mxu0 0.0
        %951 = vmatpush1.msra.mxu0 0.0
        %952 = vmatprep.subr.mxu0 0.0
        %953 = vmatpush1.msra.mxu0 0.0
        %954 = vmatprep.subr.mxu0 0.0
        %955 = vmatpush1.msra.mxu0 0.0
        %956 = vmatprep.subr.mxu0 0.0
        %957 = vmatpush1.msra.mxu0 0.0
        %958 = vmatprep.subr.mxu0 0.0
        %959 = vmatpush1.msra.mxu0 0.0
        %960 = vmatprep.subr.mxu0 0.0
        %961 = vmatpush1.msra.mxu0 0.0
        %962 = vmatprep.subr.mxu0 0.0
        %963 = vmatpush1.msra.mxu0 0.0
        %964 = vmatprep.subr.mxu0 0.0
        %965 = vmatpush1.msra.mxu0 %v412
        %966 = vmatprep.subr.mxu0 0.0
        %967 = vmatpush2.msra.mxu0 0.0
        %968 = vmatprep.subr.mxu0 0.0
        %969 = vmatpush2.msra.mxu0 0.0
        %970 = vmatprep.subr.mxu0 0.0
        %971 = vmatpush2.msra.mxu0 0.0
        %972 = vmatprep.subr.mxu0 0.0
        %973 = vmatpush2.msra.mxu0 0.0
        %974 = vmatprep.subr.mxu0 0.0
        %975 = vmatpush2.msra.mxu0 0.0
        %976 = vmatprep.subr.mxu0 0.0
        %977 = vmatpush2.msra.mxu0 0.0
        %978 = vmatprep.subr.mxu0 0.0
        %979 = vmatpush2.msra.mxu0 0.0
        %980 = vmatprep.subr.mxu0 0.0
        %981 = vmatpush2.msra.mxu0 0.0
        %982 = vmatprep.subr.mxu0 0.0
        %983 = vmatpush2.msra.mxu0 0.0
        %984 = vmatprep.subr.mxu0 0.0
        %985 = vmatpush2.msra.mxu0 0.0
        %986 = vmatprep.subr.mxu0 0.0
        %987 = vmatpush2.msra.mxu0 0.0
        %988 = vmatprep.subr.mxu0 0.0
        %989 = vmatpush2.msra.mxu0 0.0
        %990 = vmatprep.subr.mxu0 0.0
        %991 = vmatpush2.msra.mxu0 0.0
        %992 = vmatprep.subr.mxu0 0.0
        %993 = vmatpush2.msra.mxu0 0.0
        %994 = vmatprep.subr.mxu0 0.0
        %995 = vmatpush2.msra.mxu0 0.0
        %996 = vmatprep.subr.mxu0 0.0
        %997 = vmatpush2.msra.mxu0 0.0
        %998 = vmatprep.mubr.f32.mxu0 0.0
        %999 = vmatmul.mubr.f32.gmra.mxu0 %v932
        %v1000 = vpop.f32.mrf.mxu0
        %v1001 = vadd.f32 0.0, %v1000
        %v1002 = vpop.f32.mrf.mxu0
        %1003 = vdwg.mxu0
        %1005 = vrot.lane.b32.xlu0 %v483, 16
        %v1006 = vpop.permute.xlu0 %1005
        %1009 = vrot.lane.b32.xlu0 %v557, 32
        %v1010 = vpop.permute.xlu0 %1009
        %1012 = vrot.lane.b32.xlu0 %v557, 48
        %v1013 = vpop.permute.xlu0 %1012
        %1016 = vrot.lane.b32.xlu0 %v631, 64
        %v1017 = vpop.permute.xlu0 %1016
        %1019 = vrot.lane.b32.xlu0 %v631, 80
        %v1020 = vpop.permute.xlu0 %1019
        %1023 = vrot.lane.b32.xlu0 %v705, 96
        %v1024 = vpop.permute.xlu0 %1023
        %1026 = vrot.lane.b32.xlu0 %v705, 112
        %v1027 = vpop.permute.xlu0 %1026
        %1030 = vrot.lane.b32.xlu0 %v779, 16
        %v1031 = vpop.permute.xlu0 %1030
        %1034 = vrot.lane.b32.xlu0 %v853, 32
        %v1035 = vpop.permute.xlu0 %1034
        %1037 = vrot.lane.b32.xlu0 %v853, 48
        %v1038 = vpop.permute.xlu0 %1037
        %1041 = vrot.lane.b32.xlu0 %v927, 64
        %v1042 = vpop.permute.xlu0 %1041
        %1044 = vrot.lane.b32.xlu0 %v927, 80
        %v1045 = vpop.permute.xlu0 %1044
        %1048 = vrot.lane.b32.xlu0 %v1001, 96
        %v1049 = vpop.permute.xlu0 %1048
        %1051 = vrot.lane.b32.xlu0 %v1001, 112
        %v1052 = vpop.permute.xlu0 %1051
        %vm1054 = vcmask 130048
        %v1055 = vsel %vm1054, %v483, %v1006
        %vm1056 = vcmask 261120
        %v1057 = vsel %vm1056, %v1055, %v1010
        %vm1058 = vcmask 392192
        %v1059 = vsel %vm1058, %v1057, %v1013
        %vm1060 = vcmask 523264
        %v1061 = vsel %vm1060, %v1059, %v1017
        %vm1062 = vcmask 654336
        %v1063 = vsel %vm1062, %v1061, %v1020
        %vm1064 = vcmask 785408
        %v1065 = vsel %vm1064, %v1063, %v1024
        %vm1066 = vcmask 916480
        %v1067 = vsel %vm1066, %v1065, %v1027
        %v1068 = vsel %vm1054, %v779, %v1031
        %v1069 = vsel %vm1056, %v1068, %v1035
        %v1070 = vsel %vm1058, %v1069, %v1038
        %v1071 = vsel %vm1060, %v1070, %v1042
        %v1072 = vsel %vm1062, %v1071, %v1045
        %v1073 = vsel %vm1064, %v1072, %v1049
        %v1074 = vsel %vm1066, %v1073, %v1052
        %v1076 = vcombine.high %v334, %v334
        %vm1077 = vcmask 31744
        %v1079 = vsel %vm1077, %v336, 0
        %vm1081 = vcmask 1043456
        %v1082 = vsel %vm1081, %v334, 0
        %v1084 = vsel %vm1081, %v1076, 0
        %1086 = vmatprep.subr.mxu0 0.0
        %1087 = vmatpush1.msra.mxu0 0.0
        %1088 = vmatprep.subr.mxu0 0.0
        %1089 = vmatpush1.msra.mxu0 0.0
        %1090 = vmatprep.subr.mxu0 0.0
        %1091 = vmatpush1.msra.mxu0 0.0
        %1092 = vmatprep.subr.mxu0 0.0
        %1093 = vmatpush1.msra.mxu0 0.0
        %1094 = vmatprep.subr.mxu0 0.0
        %1095 = vmatpush1.msra.mxu0 0.0
        %1096 = vmatprep.subr.mxu0 0.0
        %1097 = vmatpush1.msra.mxu0 0.0
        %1098 = vmatprep.subr.mxu0 0.0
        %1099 = vmatpush1.msra.mxu0 0.0
        %1100 = vmatprep.subr.mxu0 0.0
        %1101 = vmatpush1.msra.mxu0 0.0
        %1102 = vmatprep.subr.mxu0 0.0
        %1103 = vmatpush1.msra.mxu0 0.0
        %1104 = vmatprep.subr.mxu0 0.0
        %1105 = vmatpush1.msra.mxu0 0.0
        %1106 = vmatprep.subr.mxu0 0.0
        %1107 = vmatpush1.msra.mxu0 0.0
        %1108 = vmatprep.subr.mxu0 0.0
        %1109 = vmatpush1.msra.mxu0 0.0
        %1110 = vmatprep.subr.mxu0 0.0
        %1111 = vmatpush1.msra.mxu0 0.0
        %1112 = vmatprep.subr.mxu0 0.0
        %1113 = vmatpush1.msra.mxu0 0.0
        %1114 = vmatprep.subr.mxu0 0.0
        %1115 = vmatpush1.msra.mxu0 0.0
        %1116 = vmatprep.subr.mxu0 %v1084
        %1117 = vmatpush1.msra.mxu0 %v1082
        %1118 = vmatprep.subr.mxu0 0.0
        %1119 = vmatpush2.msra.mxu0 0.0
        %1120 = vmatprep.subr.mxu0 0.0
        %1121 = vmatpush2.msra.mxu0 0.0
        %1122 = vmatprep.subr.mxu0 0.0
        %1123 = vmatpush2.msra.mxu0 0.0
        %1124 = vmatprep.subr.mxu0 0.0
        %1125 = vmatpush2.msra.mxu0 0.0
        %1126 = vmatprep.subr.mxu0 0.0
        %1127 = vmatpush2.msra.mxu0 0.0
        %1128 = vmatprep.subr.mxu0 0.0
        %1129 = vmatpush2.msra.mxu0 0.0
        %1130 = vmatprep.subr.mxu0 0.0
        %1131 = vmatpush2.msra.mxu0 0.0
        %1132 = vmatprep.subr.mxu0 0.0
        %1133 = vmatpush2.msra.mxu0 0.0
        %1134 = vmatprep.subr.mxu0 0.0
        %1135 = vmatpush2.msra.mxu0 0.0
        %1136 = vmatprep.subr.mxu0 0.0
        %1137 = vmatpush2.msra.mxu0 0.0
        %1138 = vmatprep.subr.mxu0 0.0
        %1139 = vmatpush2.msra.mxu0 0.0
        %1140 = vmatprep.subr.mxu0 0.0
        %1141 = vmatpush2.msra.mxu0 0.0
        %1142 = vmatprep.subr.mxu0 0.0
        %1143 = vmatpush2.msra.mxu0 0.0
        %1144 = vmatprep.subr.mxu0 0.0
        %1145 = vmatpush2.msra.mxu0 0.0
        %1146 = vmatprep.subr.mxu0 0.0
        %1147 = vmatpush2.msra.mxu0 0.0
        %1148 = vmatprep.subr.mxu0 0.0
        %1149 = vmatpush2.msra.mxu0 0.0
        %1150 = vmatprep.mubr.f32.mxu0 0.0
        %1151 = vmatmul.mubr.f32.gmra.mxu0 %v1079
        %v1152 = vpop.f32.mrf.mxu0
        %v1153 = vadd.f32 %v1067, %v1152
        %v1154 = vpop.f32.mrf.mxu0
        %v1155 = vadd.f32 %v1074, %v1154
        %1156 = vdwg.mxu0
        %v1157 = vld [vmem:[%s5] sm:$0xff]
        %1159 = vset.pattern.permute.xlu0 0
        %1160 = vperm.xlu0 %1159, %v1157
        %v1161 = vpop.permute.xlu0 %1160
        %v1163 = vadd.f32 %v1153, %v1161
        %v1164 = vadd.f32 %v1155, %v1161
        %1165 = vst [vmem:[%s322] sm:$0xff] %v1163
        %1166 = vst [vmem:[%s322 + $0x8] sm:$0xff] %v1164
        %s1167 = sand.u32 %s186, 1
        %s1168 = scalar_lea.sflag [#allocation4], %s1167
        %s1169 = sand.u32 %s186, 1
        %s1170 = smul.addr %s1169, 16
        %s1171 = scalar_lea.vmem [#allocation7], %s1170
        // Predicated region
        $region53: #{tpu_custom_call.1} parent=43 // pred_check
          %p1172 = pneg %p196
        $region54: #{tpu_custom_call.1} parent=43 // pred_check_branch
          %1174 = sbr.rel (%p1172) target = $region56
        $region55: #{tpu_custom_call.1} parent=43 // pred_region
          %s1175 = smul.u32 2, %s29
          %s1177 = ssub.s32 256, 256
          %1178 = vsyncadd %s1168, %s1177
          %s1179 = smul.addr %s28, 2
          %s1180 = sadd.s32 %s1175, %s1179
          %s1181 = smul.addr %s1180, 128
          %s1182 = scalar_lea.hbm %s6, %s1181
          %s1184 = sshll.u32 %s1171, 4
          %s1185 = int_to_ptr.vmem [resolvable:$true] %s1184
          %1187 = dma.vmem_to_hbm [thread:$0]  %s1185, 256, %s1182, %s1168
        $region56: #{tpu_custom_call.1} parent=43 // pred_fallthru
          _
      $region44: #{tpu_custom_call.1} parent=5 // pred_fallthru
        _
      %p1188 = scmp.le.s32.totalorder 2, %s19
      // Predicated region
      $region57: #{tpu_custom_call.1} parent=5 // pred_check
        %p1189 = pneg %p1188
      $region58: #{tpu_custom_call.1} parent=5 // pred_check_branch
        %1191 = sbr.rel (%p1189) target = $region60
      $region59: #{tpu_custom_call.1} parent=5 // pred_region
        %s1192 = ssub.s32 %s19, 2
        // Predicated region
        $region61: #{tpu_custom_call.1} parent=59 // pred_check
          %p1193 = pneg %p202
        $region62: #{tpu_custom_call.1} parent=59 // pred_check_branch
          %1195 = sbr.rel (%p1193) target = $region64
        $region63: #{tpu_custom_call.1} parent=59 // pred_region
          %s1196 = sand.u32 %s187, 1
          %s1197 = scalar_lea.sflag [#allocation4], %s1196
          %s1198 = sand.u32 %s187, 1
          %s1199 = smul.addr %s1198, 16
          %s1200 = scalar_lea.vmem [#allocation7], %s1199
          %1201 = dma.done %s1197, 256
        $region64: #{tpu_custom_call.1} parent=59 // pred_fallthru
          _
      $region60: #{tpu_custom_call.1} parent=5 // pred_fallthru
        _
    $region6: #{tpu_custom_call.1} parent=1 // loop_footer
      %s23 = sadd.s32 1, %s19
    $region7: #{tpu_custom_call.1} parent=1 // loop_footer_branch
      %18 = sbr.rel target = $region3
    $region8: #{tpu_custom_call.1} parent=1 // loop_exit
      _
    %1202 = vsyncpa [#allocation3], 1
    %s1203 = scalar_lea.sflag [#allocation3], 1
    %1204 = vsyncpa %s1203, 1
    %1205 = vsyncpa [#allocation6], 1
    %1206 = vsyncpa [#allocation4], 1
    %s1207 = scalar_lea.sflag [#allocation4], 1
    %1208 = vsyncpa %s1207, 1

// kernel: tpu_custom_call.1
$region0: #{tpu_custom_call.1}
  #allocation0 [shape = 'u32[]', space=smem, size = 0x4, offset = 0x4, fixed_abs, tag = 'smem constant byte address 0x4 - core index']
  #allocation1 [shape = 'u32[144,128]{1,0:T(1,128)}', space=vmem, size = 0x12000, scoped, tag = 'internal scratch']
  %s0 = inlined_call_operand.vmem [shape: f32[2,4,256], index: 0, kind: input, shape index: {}]
  %s1 = inlined_call_operand.hbm [shape: f32[2,8,64], index: 1, kind: input, shape index: {}]
  %s2 = inlined_call_operand.vmem [shape: f32[8,4], index: 2, kind: input, shape index: {}]
  %s3 = inlined_call_operand.vmem [shape: f32[8,8], index: 3, kind: input, shape index: {}]
  %s4 = inlined_call_operand.hbm [shape: f32[8,16], index: 4, kind: input, shape index: {}]
  %s5 = inlined_call_operand.vmem [shape: f32[8,1], index: 5, kind: input, shape index: {}]
  %s6 = inlined_call_operand.hbm [shape: f32[2,8,256], index: 6, kind: output, shape index: {}]
  %s7 = sld [smem:[#allocation0]]
  $region65: #{tpu_custom_call.1} parent=0
    _
  %s9 = ssub.s32 1, %s7
  %s10 = scalar_select 0, %s9, %s7
  $region1: #{tpu_custom_call.1} parent=0
    #allocation2 [shape = 'u8[8192]{0}', space=vmem, size = 0x2000, scoped, tag = 'input window, operand 1']
    #allocation3 [shape = 's32[2]{0}', space=sflag, size = 0x8, scoped, tag = 'scoped memory for tpu_custom_call.1']
    #allocation4 [shape = 's32[2]{0}', space=sflag, size = 0x8, scoped, tag = 'scoped memory for tpu_custom_call.1']
    #allocation5 [shape = 'u8[4096]{0}', space=vmem, size = 0x1000, scoped, tag = 'input window, operand 4, single buffered']
    #allocation6 [shape = 's32[1]{0}', space=sflag, size = 0x4, scoped, tag = 'scoped memory for tpu_custom_call.1']
    #allocation7 [shape = 'u8[16384]{0}', space=vmem, size = 0x4000, scoped, tag = 'output window, operand 0']
    %11 = vsyncpa [#allocation3], 0
    %s12 = scalar_lea.sflag [#allocation3], 1
    %13 = vsyncpa %s12, 0
    %14 = vsyncpa [#allocation6], 0
    %15 = vsyncpa [#allocation4], 0
    %s16 = scalar_lea.sflag [#allocation4], 1
    %17 = vsyncpa %s16, 0
    loop: start=0, step=1, limit=4
    $region2: #{tpu_custom_call.1} parent=1 // loop_pre_header
      _
    $region3: #{tpu_custom_call.1} parent=1 // loop_header
      %s19 = sphi 0, %s23
      %p20 = scmp.ge.s32.totalorder %s19, 4
      %s26 = sphi 0, %s38
      %s27 = sphi 0, %s34
      %s28 = sphi 0, %s26
      %s29 = sphi 0, %s27
      %s30 = sphi 0, %s28
      %s31 = sphi 0, %s29
      %s43 = sphi 0, %s45
      %s46 = sphi 0, %s43
      %s47 = sphi 0, %s46
      %s63 = sphi 0, %s47
      %s71 = sphi 0, %s73
      %s74 = sphi 0, %s71
      %s75 = sphi 0, %s74
      %s91 = sphi 0, %s75
      %s95 = sphi 0, %s95
      %s97 = sphi 0, %s95
      %s98 = sphi 0, %s97
      %s112 = sphi 0, %s98
      %s116 = sphi 0, %s116
      %s118 = sphi 0, %s116
      %s119 = sphi 0, %s118
      %s133 = sphi 0, %s119
      %s137 = sphi 0, %s137
      %s139 = sphi 0, %s137
      %s140 = sphi 0, %s139
      %s154 = sphi 0, %s140
      %s158 = sphi 0, %s158
      %s160 = sphi 0, %s158
      %s161 = sphi 0, %s160
      %s175 = sphi 0, %s161
      %s183 = sphi 0, %s185
      %s186 = sphi 0, %s183
      %s187 = sphi 0, %s186
      %s203 = sphi 0, %s187
    $region4: #{tpu_custom_call.1} parent=1 // loop_header_branch
      %22 = sbr.rel (%p20) target = $region8
    $region5: #{tpu_custom_call.1} parent=1 // loop_body
      %s24 = ssub.s32 %s19, 1
      %s25 = ssub.s32 %s19, 2
      %s32 = sadd.s32 1, %s27
      %p33 = scmp.ge.s32.totalorder %s32, 1
      %s34 = scalar_select %p33, 0, %s32
      %s35 = sadd.s32 1, %s26
      %s36 = scalar_select %p33, %s35, %s26
      %p37 = scmp.ge.s32.totalorder %s36, 2
      %s38 = scalar_select %p37, 0, %s36
      %s39 = ssub.s32 %s26, %s38
      %s40 = ssub.s32 %s27, %s34
      %s41 = sor.u32 %s39, %s40
      %p42 = scmp.eq.s32.totalorder %s41, 0
      %s44 = sadd.s32 %s43, 1
      %s45 = scalar_select %p42, %s43, %s44
      %p48 = pneg %p42
      %p49 = scmp.eq.s32.totalorder %s19, 1
      %p50 = por %p48, %p49
      %p51 = scmp.ne.s32.totalorder %s43, %s46
      %p52 = scmp.eq.s32.totalorder %s19, 0
      %p53 = por %p51, %p52
      %p54 = scmp.ne.s32.totalorder %s43, %s46
      %p55 = scmp.eq.s32.totalorder %s24, 1
      %p56 = por %p54, %p55
      %p57 = scmp.ne.s32.totalorder %s46, %s47
      %p58 = scmp.eq.s32.totalorder %s24, 0
      %p59 = por %p57, %p58
      %p60 = scmp.ne.s32.totalorder %s46, %s47
      %p61 = scmp.eq.s32.totalorder %s25, 1
      %p62 = por %p60, %p61
      %p64 = scmp.ne.s32.totalorder %s47, %s63
      %p65 = scmp.eq.s32.totalorder %s25, 0
      %p66 = por %p64, %p65
      %s67 = ssub.s32 %s26, %s38
      %s68 = ssub.s32 %s27, %s34
      %s69 = sor.u32 %s67, %s68
      %p70 = scmp.eq.s32.totalorder %s69, 0
      %s72 = sadd.s32 %s71, 1
      %s73 = scalar_select %p70, %s71, %s72
      %p76 = pneg %p70
      %p77 = scmp.eq.s32.totalorder %s19, 1
      %p78 = por %p76, %p77
      %p79 = scmp.ne.s32.totalorder %s71, %s74
      %p80 = scmp.eq.s32.totalorder %s19, 0
      %p81 = por %p79, %p80
      %p82 = scmp.ne.s32.totalorder %s71, %s74
      %p83 = scmp.eq.s32.totalorder %s24, 1
      %p84 = por %p82, %p83
      %p85 = scmp.ne.s32.totalorder %s74, %s75
      %p86 = scmp.eq.s32.totalorder %s24, 0
      %p87 = por %p85, %p86
      %p88 = scmp.ne.s32.totalorder %s74, %s75
      %p89 = scmp.eq.s32.totalorder %s25, 1
      %p90 = por %p88, %p89
      %p92 = scmp.ne.s32.totalorder %s75, %s91
      %p93 = scmp.eq.s32.totalorder %s25, 0
      %p94 = por %p92, %p93
      %s96 = sadd.s32 %s95, 1
      %p99 = scmp.eq.s32.totalorder %s19, 1
      %p100 = scmp.ne.s32.totalorder %s95, %s97
      %p101 = scmp.eq.s32.totalorder %s19, 0
      %p102 = por %p100, %p101
      %p103 = scmp.ne.s32.totalorder %s95, %s97
      %p104 = scmp.eq.s32.totalorder %s24, 1
      %p105 = por %p103, %p104
      %p106 = scmp.ne.s32.totalorder %s97, %s98
      %p107 = scmp.eq.s32.totalorder %s24, 0
      %p108 = por %p106, %p107
      %p109 = scmp.ne.s32.totalorder %s97, %s98
      %p110 = scmp.eq.s32.totalorder %s25, 1
      %p111 = por %p109, %p110
      %p113 = scmp.ne.s32.totalorder %s98, %s112
      %p114 = scmp.eq.s32.totalorder %s25, 0
      %p115 = por %p113, %p114
      %s117 = sadd.s32 %s116, 1
      %p120 = scmp.eq.s32.totalorder %s19, 1
      %p121 = scmp.ne.s32.totalorder %s116, %s118
      %p122 = scmp.eq.s32.totalorder %s19, 0
      %p123 = por %p121, %p122
      %p124 = scmp.ne.s32.totalorder %s116, %s118
      %p125 = scmp.eq.s32.totalorder %s24, 1
      %p126 = por %p124, %p125
      %p127 = scmp.ne.s32.totalorder %s118, %s119
      %p128 = scmp.eq.s32.totalorder %s24, 0
      %p129 = por %p127, %p128
      %p130 = scmp.ne.s32.totalorder %s118, %s119
      %p131 = scmp.eq.s32.totalorder %s25, 1
      %p132 = por %p130, %p131
      %p134 = scmp.ne.s32.totalorder %s119, %s133
      %p135 = scmp.eq.s32.totalorder %s25, 0
      %p136 = por %p134, %p135
      %s138 = sadd.s32 %s137, 1
      %p141 = scmp.eq.s32.totalorder %s19, 1
      %p142 = scmp.ne.s32.totalorder %s137, %s139
      %p143 = scmp.eq.s32.totalorder %s19, 0
      %p144 = por %p142, %p143
      %p145 = scmp.ne.s32.totalorder %s137, %s139
      %p146 = scmp.eq.s32.totalorder %s24, 1
      %p147 = por %p145, %p146
      %p148 = scmp.ne.s32.totalorder %s139, %s140
      %p149 = scmp.eq.s32.totalorder %s24, 0
      %p150 = por %p148, %p149
      %p151 = scmp.ne.s32.totalorder %s139, %s140
      %p152 = scmp.eq.s32.totalorder %s25, 1
      %p153 = por %p151, %p152
      %p155 = scmp.ne.s32.totalorder %s140, %s154
      %p156 = scmp.eq.s32.totalorder %s25, 0
      %p157 = por %p155, %p156
      %s159 = sadd.s32 %s158, 1
      %p162 = scmp.eq.s32.totalorder %s19, 1
      %p163 = scmp.ne.s32.totalorder %s158, %s160
      %p164 = scmp.eq.s32.totalorder %s19, 0
      %p165 = por %p163, %p164
      %p166 = scmp.ne.s32.totalorder %s158, %s160
      %p167 = scmp.eq.s32.totalorder %s24, 1
      %p168 = por %p166, %p167
      %p169 = scmp.ne.s32.totalorder %s160, %s161
      %p170 = scmp.eq.s32.totalorder %s24, 0
      %p171 = por %p169, %p170
      %p172 = scmp.ne.s32.totalorder %s160, %s161
      %p173 = scmp.eq.s32.totalorder %s25, 1
      %p174 = por %p172, %p173
      %p176 = scmp.ne.s32.totalorder %s161, %s175
      %p177 = scmp.eq.s32.totalorder %s25, 0
      %p178 = por %p176, %p177
      %s179 = ssub.s32 %s26, %s38
      %s180 = ssub.s32 %s27, %s34
      %s181 = sor.u32 %s179, %s180
      %p182 = scmp.eq.s32.totalorder %s181, 0
      %s184 = sadd.s32 %s183, 1
      %s185 = scalar_select %p182, %s183, %s184
      %p188 = pneg %p182
      %p189 = scmp.eq.s32.totalorder %s19, 1
      %p190 = por %p188, %p189
      %p191 = scmp.ne.s32.totalorder %s183, %s186
      %p192 = scmp.eq.s32.totalorder %s19, 0
      %p193 = por %p191, %p192
      %p194 = scmp.ne.s32.totalorder %s183, %s186
      %p195 = scmp.eq.s32.totalorder %s24, 1
      %p196 = por %p194, %p195
      %p197 = scmp.ne.s32.totalorder %s186, %s187
      %p198 = scmp.eq.s32.totalorder %s24, 0
      %p199 = por %p197, %p198
      %p200 = scmp.ne.s32.totalorder %s186, %s187
      %p201 = scmp.eq.s32.totalorder %s25, 1
      %p202 = por %p200, %p201
      %p204 = scmp.ne.s32.totalorder %s187, %s203
      %p205 = scmp.eq.s32.totalorder %s25, 0
      %p206 = por %p204, %p205
      %p207 = scmp.le.s32.totalorder 1, %s19
      %p208 = scmp.lt.s32.totalorder %s19, 3
      %p209 = pnand %p207, %p208
      %p210 = pneg %p209
      // Predicated region
      $region9: #{tpu_custom_call.1} parent=5 // pred_check
        _
      $region10: #{tpu_custom_call.1} parent=5 // pred_check_branch
        %212 = sbr.rel (%p209) target = $region12
      $region11: #{tpu_custom_call.1} parent=5 // pred_region
        %s213 = ssub.s32 %s19, 1
        // Predicated region
        $region13: #{tpu_custom_call.1} parent=11 // pred_check
          %p214 = pneg %p108
        $region14: #{tpu_custom_call.1} parent=11 // pred_check_branch
          %216 = sbr.rel (%p214) target = $region16
        $region15: #{tpu_custom_call.1} parent=11 // pred_region
          _
        $region16: #{tpu_custom_call.1} parent=11 // pred_fallthru
          _
        // Predicated region
        $region17: #{tpu_custom_call.1} parent=11 // pred_check
          %p217 = pneg %p129
        $region18: #{tpu_custom_call.1} parent=11 // pred_check_branch
          %219 = sbr.rel (%p217) target = $region20
        $region19: #{tpu_custom_call.1} parent=11 // pred_region
          _
        $region20: #{tpu_custom_call.1} parent=11 // pred_fallthru
          _
        // Predicated region
        $region21: #{tpu_custom_call.1} parent=11 // pred_check
          %p220 = pneg %p150
        $region22: #{tpu_custom_call.1} parent=11 // pred_check_branch
          %222 = sbr.rel (%p220) target = $region24
        $region23: #{tpu_custom_call.1} parent=11 // pred_region
          %s224 = ssub.s32 128, 128
          %225 = vsyncadd [#allocation6], %s224
          %s227 = sshll.u32 [#allocation5], 4
          %s228 = int_to_ptr.vmem [resolvable:$true] %s227
          %230 = dma.hbm_to_vmem [thread:$0]  %s4, 128, %s228, [#allocation6]
        $region24: #{tpu_custom_call.1} parent=11 // pred_fallthru
          _
        // Predicated region
        $region25: #{tpu_custom_call.1} parent=11 // pred_check
          %p231 = pneg %p171
        $region26: #{tpu_custom_call.1} parent=11 // pred_check_branch
          %233 = sbr.rel (%p231) target = $region28
        $region27: #{tpu_custom_call.1} parent=11 // pred_region
          _
        $region28: #{tpu_custom_call.1} parent=11 // pred_fallthru
          _
      $region12: #{tpu_custom_call.1} parent=5 // pred_fallthru
        _
      %p234 = scmp.lt.s32.totalorder %s19, 2
      // Predicated region
      $region29: #{tpu_custom_call.1} parent=5 // pred_check
        %p235 = pneg %p234
      $region30: #{tpu_custom_call.1} parent=5 // pred_check_branch
        %237 = sbr.rel (%p235) target = $region32
      $region31: #{tpu_custom_call.1} parent=5 // pred_region
        // Predicated region
        $region33: #{tpu_custom_call.1} parent=31 // pred_check
          %p238 = pneg %p53
        $region34: #{tpu_custom_call.1} parent=31 // pred_check_branch
          %240 = sbr.rel (%p238) target = $region36
        $region35: #{tpu_custom_call.1} parent=31 // pred_region
          %s241 = smul.u32 2, %s27
          %p242 = scmp.lt.s32.totalorder %s26, 1
          %s243 = scalar_select %p242, %s26, 1
          %p244 = scmp.lt.s32.totalorder %s241, 1
          %s245 = scalar_select %p244, %s241, 1
          %s246 = smul.addr %s243, 2
          %s247 = sadd.s32 %s245, %s246
          %s248 = smul.addr %s247, 4
          %s249 = scalar_lea.vmem %s0, %s248
          %s250 = smul.u32 2, %s27
        $region36: #{tpu_custom_call.1} parent=31 // pred_fallthru
          _
        // Predicated region
        $region37: #{tpu_custom_call.1} parent=31 // pred_check
          %p251 = pneg %p81
        $region38: #{tpu_custom_call.1} parent=31 // pred_check_branch
          %253 = sbr.rel (%p251) target = $region40
        $region39: #{tpu_custom_call.1} parent=31 // pred_region
          %s254 = sand.u32 %s71, 1
          %s255 = scalar_lea.sflag [#allocation3], %s254
          %s256 = sand.u32 %s71, 1
          %s257 = smul.addr %s256, 8
          %s258 = scalar_lea.vmem [#allocation2], %s257
          %s260 = ssub.s32 128, 128
          %261 = vsyncadd %s255, %s260
          %s262 = sadd.s32 %s27, %s26
          %s263 = smul.addr %s262, 128
          %s264 = scalar_lea.hbm %s1, %s263
          %s266 = sshll.u32 %s258, 4
          %s267 = int_to_ptr.vmem [resolvable:$true] %s266
          %269 = dma.hbm_to_vmem [thread:$0]  %s264, 128, %s267, %s255
        $region40: #{tpu_custom_call.1} parent=31 // pred_fallthru
          _
      $region32: #{tpu_custom_call.1} parent=5 // pred_fallthru
        _
      %p270 = scmp.le.s32.totalorder 1, %s19
      %p271 = scmp.lt.s32.totalorder %s19, 3
      %p272 = pnand %p270, %p271
      %p273 = pneg %p272
      // Predicated region
      $region41: #{tpu_custom_call.1} parent=5 // pred_check
        _
      $region42: #{tpu_custom_call.1} parent=5 // pred_check_branch
        %275 = sbr.rel (%p272) target = $region44
      $region43: #{tpu_custom_call.1} parent=5 // pred_region
        %s276 = ssub.s32 %s19, 1
        %s277 = sand.u32 %s74, 1
        %s278 = scalar_lea.sflag [#allocation3], %s277
        %s279 = sand.u32 %s74, 1
        %s280 = smul.addr %s279, 8
        %s281 = scalar_lea.vmem [#allocation2], %s280
        // Predicated region
        $region45: #{tpu_custom_call.1} parent=43 // pred_check
          %p282 = pneg %p87
        $region46: #{tpu_custom_call.1} parent=43 // pred_check_branch
          %284 = sbr.rel (%p282) target = $region48
        $region47: #{tpu_custom_call.1} parent=43 // pred_region
          %285 = dma.done %s278, 128
        $region48: #{tpu_custom_call.1} parent=43 // pred_fallthru
          _
        // Predicated region
        $region49: #{tpu_custom_call.1} parent=43 // pred_check
          %p286 = pneg %p150
        $region50: #{tpu_custom_call.1} parent=43 // pred_check_branch
          %288 = sbr.rel (%p286) target = $region52
        $region51: #{tpu_custom_call.1} parent=43 // pred_region
          %289 = dma.done [#allocation6], 128
        $region52: #{tpu_custom_call.1} parent=43 // pred_fallthru
          _
        %s290 = smul.u32 2, %s29
        %p291 = scmp.lt.s32.totalorder %s28, 1
        %s292 = scalar_select %p291, %s28, 1
        %p293 = scmp.lt.s32.totalorder %s290, 1
        %s294 = scalar_select %p293, %s290, 1
        %s295 = smul.addr %s292, 2
        %s296 = sadd.s32 %s294, %s295
        %s297 = smul.addr %s296, 4
        %s298 = scalar_lea.vmem %s0, %s297
        %p299 = pneg %p59
        %p300 = pneg %p56
        %s301 = sand.u32 %s74, 1
        %s302 = scalar_lea.sflag [#allocation3], %s301
        %s303 = sand.u32 %s74, 1
        %s304 = smul.addr %s303, 8
        %s305 = scalar_lea.vmem [#allocation2], %s304
        %p306 = pneg %p87
        %p307 = pneg %p84
        %p308 = pneg %p108
        %p309 = pneg %p105
        %p310 = pneg %p129
        %p311 = pneg %p126
        %p312 = pneg %p150
        %p313 = pneg %p147
        %p314 = pneg %p171
        %p315 = pneg %p168
        %p316 = pneg %p199
        %p317 = pneg %p196
        %s318 = sand.u32 %s186, 1
        %s319 = scalar_lea.sflag [#allocation4], %s318
        %s320 = sand.u32 %s186, 1
        %s321 = smul.addr %s320, 16
        %s322 = scalar_lea.vmem [#allocation7], %s321
        %s323 = smul.u32 2, %s29
        %p324 = scmp.lt.s32.totalorder %s28, 1
        %s325 = scalar_select %p324, %s28, 1
        %p326 = scmp.lt.s32.totalorder %s323, 1
        %s327 = scalar_select %p326, %s323, 1
        %s328 = smul.addr %s325, 2
        %s329 = sadd.s32 %s327, %s328
        %s330 = smul.addr %s329, 4
        %s331 = scalar_lea.vmem %s0, %s330
        %s332 = smul.u32 2, %s29
        %s333 = smul.u32 2, %s29
        %v334 = vld [vmem:[%s331] sm:$0xff]
        %v335 = vld [vmem:[%s281] sm:$0xff]
        %v336 = vld [vmem:[%s2] sm:$0xff]
        %v337 = vld [vmem:[%s3] sm:$0xff]
        %vm338 = vcmask 64512
        %v340 = vsel %vm338, %v337, 0
        %342 = vmatprep.subr.mxu0 0.0
        %343 = vmatpush1.msra.mxu0 0.0
        %344 = vmatprep.subr.mxu0 0.0
        %345 = vmatpush1.msra.mxu0 0.0
        %346 = vmatprep.subr.mxu0 0.0
        %347 = vmatpush1.msra.mxu0 0.0
        %348 = vmatprep.subr.mxu0 0.0
        %349 = vmatpush1.msra.mxu0 0.0
        %350 = vmatprep.subr.mxu0 0.0
        %351 = vmatpush1.msra.mxu0 0.0
        %352 = vmatprep.subr.mxu0 0.0
        %353 = vmatpush1.msra.mxu0 0.0
        %354 = vmatprep.subr.mxu0 0.0
        %355 = vmatpush1.msra.mxu0 0.0
        %356 = vmatprep.subr.mxu0 0.0
        %357 = vmatpush1.msra.mxu0 0.0
        %358 = vmatprep.subr.mxu0 0.0
        %359 = vmatpush1.msra.mxu0 0.0
        %360 = vmatprep.subr.mxu0 0.0
        %361 = vmatpush1.msra.mxu0 0.0
        %362 = vmatprep.subr.mxu0 0.0
        %363 = vmatpush1.msra.mxu0 0.0
        %364 = vmatprep.subr.mxu0 0.0
        %365 = vmatpush1.msra.mxu0 0.0
        %366 = vmatprep.subr.mxu0 0.0
        %367 = vmatpush1.msra.mxu0 0.0
        %368 = vmatprep.subr.mxu0 0.0
        %369 = vmatpush1.msra.mxu0 0.0
        %370 = vmatprep.subr.mxu0 0.0
        %371 = vmatpush1.msra.mxu0 0.0
        %372 = vmatprep.subr.mxu0 0.0
        %373 = vmatpush1.msra.mxu0 %v335
        %374 = vmatprep.subr.mxu0 0.0
        %375 = vmatpush2.msra.mxu0 0.0
        %376 = vmatprep.subr.mxu0 0.0
        %377 = vmatpush2.msra.mxu0 0.0
        %378 = vmatprep.subr.mxu0 0.0
        %379 = vmatpush2.msra.mxu0 0.0
        %380 = vmatprep.subr.mxu0 0.0
        %381 = vmatpush2.msra.mxu0 0.0
        %382 = vmatprep.subr.mxu0 0.0
        %383 = vmatpush2.msra.mxu0 0.0
        %384 = vmatprep.subr.mxu0 0.0
        %385 = vmatpush2.msra.mxu0 0.0
        %386 = vmatprep.subr.mxu0 0.0
        %387 = vmatpush2.msra.mxu0 0.0
        %388 = vmatprep.subr.mxu0 0.0
        %389 = vmatpush2.msra.mxu0 0.0
        %390 = vmatprep.subr.mxu0 0.0
        %391 = vmatpush2.msra.mxu0 0.0
        %392 = vmatprep.subr.mxu0 0.0
        %393 = vmatpush2.msra.mxu0 0.0
        %394 = vmatprep.subr.mxu0 0.0
        %395 = vmatpush2.msra.mxu0 0.0
        %396 = vmatprep.subr.mxu0 0.0
        %397 = vmatpush2.msra.mxu0 0.0
        %398 = vmatprep.subr.mxu0 0.0
        %399 = vmatpush2.msra.mxu0 0.0
        %400 = vmatprep.subr.mxu0 0.0
        %401 = vmatpush2.msra.mxu0 0.0
        %402 = vmatprep.subr.mxu0 0.0
        %403 = vmatpush2.msra.mxu0 0.0
        %404 = vmatprep.subr.mxu0 0.0
        %405 = vmatpush2.msra.mxu0 0.0
        %406 = vmatprep.mubr.f32.mxu0 0.0
        %407 = vmatmul.mubr.f32.gmra.mxu0 %v340
        %v408 = vpop.f32.mrf.mxu0
        %v409 = vadd.f32 0.0, %v408
        %v410 = vpop.f32.mrf.mxu0
        %411 = vdwg.mxu0
        %v412 = vld [vmem:[#allocation5] sm:$0xff]
        %v414 = vsel %vm338, %v409, 0
        %416 = vmatprep.subr.mxu0 0.0
        %417 = vmatpush1.msra.mxu0 0.0
        %418 = vmatprep.subr.mxu0 0.0
        %419 = vmatpush1.msra.mxu0 0.0
        %420 = vmatprep.subr.mxu0 0.0
        %421 = vmatpush1.msra.mxu0 0.0
        %422 = vmatprep.subr.mxu0 0.0
        %423 = vmatpush1.msra.mxu0 0.0
        %424 = vmatprep.subr.mxu0 0.0
        %425 = vmatpush1.msra.mxu0 0.0
        %426 = vmatprep.subr.mxu0 0.0
        %427 = vmatpush1.msra.mxu0 0.0
        %428 = vmatprep.subr.mxu0 0.0
        %429 = vmatpush1.msra.mxu0 0.0
        %430 = vmatprep.subr.mxu0 0.0
        %431 = vmatpush1.msra.mxu0 0.0
        %432 = vmatprep.subr.mxu0 0.0
        %433 = vmatpush1.msra.mxu0 0.0
        %434 = vmatprep.subr.mxu0 0.0
        %435 = vmatpush1.msra.mxu0 0.0
        %436 = vmatprep.subr.mxu0 0.0
        %437 = vmatpush1.msra.mxu0 0.0
        %438 = vmatprep.subr.mxu0 0.0
        %439 = vmatpush1.msra.mxu0 0.0
        %440 = vmatprep.subr.mxu0 0.0
        %441 = vmatpush1.msra.mxu0 0.0
        %442 = vmatprep.subr.mxu0 0.0
        %443 = vmatpush1.msra.mxu0 0.0
        %444 = vmatprep.subr.mxu0 0.0
        %445 = vmatpush1.msra.mxu0 0.0
        %446 = vmatprep.subr.mxu0 0.0
        %447 = vmatpush1.msra.mxu0 %v412
        %448 = vmatprep.subr.mxu0 0.0
        %449 = vmatpush2.msra.mxu0 0.0
        %450 = vmatprep.subr.mxu0 0.0
        %451 = vmatpush2.msra.mxu0 0.0
        %452 = vmatprep.subr.mxu0 0.0
        %453 = vmatpush2.msra.mxu0 0.0
        %454 = vmatprep.subr.mxu0 0.0
        %455 = vmatpush2.msra.mxu0 0.0
        %456 = vmatprep.subr.mxu0 0.0
        %457 = vmatpush2.msra.mxu0 0.0
        %458 = vmatprep.subr.mxu0 0.0
        %459 = vmatpush2.msra.mxu0 0.0
        %460 = vmatprep.subr.mxu0 0.0
        %461 = vmatpush2.msra.mxu0 0.0
        %462 = vmatprep.subr.mxu0 0.0
        %463 = vmatpush2.msra.mxu0 0.0
        %464 = vmatprep.subr.mxu0 0.0
        %465 = vmatpush2.msra.mxu0 0.0
        %466 = vmatprep.subr.mxu0 0.0
        %467 = vmatpush2.msra.mxu0 0.0
        %468 = vmatprep.subr.mxu0 0.0
        %469 = vmatpush2.msra.mxu0 0.0
        %470 = vmatprep.subr.mxu0 0.0
        %471 = vmatpush2.msra.mxu0 0.0
        %472 = vmatprep.subr.mxu0 0.0
        %473 = vmatpush2.msra.mxu0 0.0
        %474 = vmatprep.subr.mxu0 0.0
        %475 = vmatpush2.msra.mxu0 0.0
        %476 = vmatprep.subr.mxu0 0.0
        %477 = vmatpush2.msra.mxu0 0.0
        %478 = vmatprep.subr.mxu0 0.0
        %479 = vmatpush2.msra.mxu0 0.0
        %480 = vmatprep.mubr.f32.mxu0 0.0
        %481 = vmatmul.mubr.f32.gmra.mxu0 %v414
        %v482 = vpop.f32.mrf.mxu0
        %v483 = vadd.f32 0.0, %v482
        %v484 = vpop.f32.mrf.mxu0
        %485 = vdwg.mxu0
        %486 = vrot.lane.b32.xlu0 %v409, 120
        %v487 = vpop.permute.xlu0 %486
        %v488 = vsel %vm338, %v487, 0
        %490 = vmatprep.subr.mxu0 0.0
        %491 = vmatpush1.msra.mxu0 0.0
        %492 = vmatprep.subr.mxu0 0.0
        %493 = vmatpush1.msra.mxu0 0.0
        %494 = vmatprep.subr.mxu0 0.0
        %495 = vmatpush1.msra.mxu0 0.0
        %496 = vmatprep.subr.mxu0 0.0
        %497 = vmatpush1.msra.mxu0 0.0
        %498 = vmatprep.subr.mxu0 0.0
        %499 = vmatpush1.msra.mxu0 0.0
        %500 = vmatprep.subr.mxu0 0.0
        %501 = vmatpush1.msra.mxu0 0.0
        %502 = vmatprep.subr.mxu0 0.0
        %503 = vmatpush1.msra.mxu0 0.0
        %504 = vmatprep.subr.mxu0 0.0
        %505 = vmatpush1.msra.mxu0 0.0
        %506 = vmatprep.subr.mxu0 0.0
        %507 = vmatpush1.msra.mxu0 0.0
        %508 = vmatprep.subr.mxu0 0.0
        %509 = vmatpush1.msra.mxu0 0.0
        %510 = vmatprep.subr.mxu0 0.0
        %511 = vmatpush1.msra.mxu0 0.0
        %512 = vmatprep.subr.mxu0 0.0
        %513 = vmatpush1.msra.mxu0 0.0
        %514 = vmatprep.subr.mxu0 0.0
        %515 = vmatpush1.msra.mxu0 0.0
        %516 = vmatprep.subr.mxu0 0.0
        %517 = vmatpush1.msra.mxu0 0.0
        %518 = vmatprep.subr.mxu0 0.0
        %519 = vmatpush1.msra.mxu0 0.0
        %520 = vmatprep.subr.mxu0 0.0
        %521 = vmatpush1.msra.mxu0 %v412
        %522 = vmatprep.subr.mxu0 0.0
        %523 = vmatpush2.msra.mxu0 0.0
        %524 = vmatprep.subr.mxu0 0.0
        %525 = vmatpush2.msra.mxu0 0.0
        %526 = vmatprep.subr.mxu0 0.0
        %527 = vmatpush2.msra.mxu0 0.0
        %528 = vmatprep.subr.mxu0 0.0
        %529 = vmatpush2.msra.mxu0 0.0
        %530 = vmatprep.subr.mxu0 0.0
        %531 = vmatpush2.msra.mxu0 0.0
        %532 = vmatprep.subr.mxu0 0.0
        %533 = vmatpush2.msra.mxu0 0.0
        %534 = vmatprep.subr.mxu0 0.0
        %535 = vmatpush2.msra.mxu0 0.0
        %536 = vmatprep.subr.mxu0 0.0
        %537 = vmatpush2.msra.mxu0 0.0
        %538 = vmatprep.subr.mxu0 0.0
        %539 = vmatpush2.msra.mxu0 0.0
        %540 = vmatprep.subr.mxu0 0.0
        %541 = vmatpush2.msra.mxu0 0.0
        %542 = vmatprep.subr.mxu0 0.0
        %543 = vmatpush2.msra.mxu0 0.0
        %544 = vmatprep.subr.mxu0 0.0
        %545 = vmatpush2.msra.mxu0 0.0
        %546 = vmatprep.subr.mxu0 0.0
        %547 = vmatpush2.msra.mxu0 0.0
        %548 = vmatprep.subr.mxu0 0.0
        %549 = vmatpush2.msra.mxu0 0.0
        %550 = vmatprep.subr.mxu0 0.0
        %551 = vmatpush2.msra.mxu0 0.0
        %552 = vmatprep.subr.mxu0 0.0
        %553 = vmatpush2.msra.mxu0 0.0
        %554 = vmatprep.mubr.f32.mxu0 0.0
        %555 = vmatmul.mubr.f32.gmra.mxu0 %v488
        %v556 = vpop.f32.mrf.mxu0
        %v557 = vadd.f32 0.0, %v556
        %v558 = vpop.f32.mrf.mxu0
        %559 = vdwg.mxu0
        %560 = vrot.lane.b32.xlu0 %v409, 112
        %v561 = vpop.permute.xlu0 %560
        %v562 = vsel %vm338, %v561, 0
        %564 = vmatprep.subr.mxu0 0.0
        %565 = vmatpush1.msra.mxu0 0.0
        %566 = vmatprep.subr.mxu0 0.0
        %567 = vmatpush1.msra.mxu0 0.0
        %568 = vmatprep.subr.mxu0 0.0
        %569 = vmatpush1.msra.mxu0 0.0
        %570 = vmatprep.subr.mxu0 0.0
        %571 = vmatpush1.msra.mxu0 0.0
        %572 = vmatprep.subr.mxu0 0.0
        %573 = vmatpush1.msra.mxu0 0.0
        %574 = vmatprep.subr.mxu0 0.0
        %575 = vmatpush1.msra.mxu0 0.0
        %576 = vmatprep.subr.mxu0 0.0
        %577 = vmatpush1.msra.mxu0 0.0
        %578 = vmatprep.subr.mxu0 0.0
        %579 = vmatpush1.msra.mxu0 0.0
        %580 = vmatprep.subr.mxu0 0.0
        %581 = vmatpush1.msra.mxu0 0.0
        %582 = vmatprep.subr.mxu0 0.0
        %583 = vmatpush1.msra.mxu0 0.0
        %584 = vmatprep.subr.mxu0 0.0
        %585 = vmatpush1.msra.mxu0 0.0
        %586 = vmatprep.subr.mxu0 0.0
        %587 = vmatpush1.msra.mxu0 0.0
        %588 = vmatprep.subr.mxu0 0.0
        %589 = vmatpush1.msra.mxu0 0.0
        %590 = vmatprep.subr.mxu0 0.0
        %591 = vmatpush1.msra.mxu0 0.0
        %592 = vmatprep.subr.mxu0 0.0
        %593 = vmatpush1.msra.mxu0 0.0
        %594 = vmatprep.subr.mxu0 0.0
        %595 = vmatpush1.msra.mxu0 %v412
        %596 = vmatprep.subr.mxu0 0.0
        %597 = vmatpush2.msra.mxu0 0.0
        %598 = vmatprep.subr.mxu0 0.0
        %599 = vmatpush2.msra.mxu0 0.0
        %600 = vmatprep.subr.mxu0 0.0
        %601 = vmatpush2.msra.mxu0 0.0
        %602 = vmatprep.subr.mxu0 0.0
        %603 = vmatpush2.msra.mxu0 0.0
        %604 = vmatprep.subr.mxu0 0.0
        %605 = vmatpush2.msra.mxu0 0.0
        %606 = vmatprep.subr.mxu0 0.0
        %607 = vmatpush2.msra.mxu0 0.0
        %608 = vmatprep.subr.mxu0 0.0
        %609 = vmatpush2.msra.mxu0 0.0
        %610 = vmatprep.subr.mxu0 0.0
        %611 = vmatpush2.msra.mxu0 0.0
        %612 = vmatprep.subr.mxu0 0.0
        %613 = vmatpush2.msra.mxu0 0.0
        %614 = vmatprep.subr.mxu0 0.0
        %615 = vmatpush2.msra.mxu0 0.0
        %616 = vmatprep.subr.mxu0 0.0
        %617 = vmatpush2.msra.mxu0 0.0
        %618 = vmatprep.subr.mxu0 0.0
        %619 = vmatpush2.msra.mxu0 0.0
        %620 = vmatprep.subr.mxu0 0.0
        %621 = vmatpush2.msra.mxu0 0.0
        %622 = vmatprep.subr.mxu0 0.0
        %623 = vmatpush2.msra.mxu0 0.0
        %624 = vmatprep.subr.mxu0 0.0
        %625 = vmatpush2.msra.mxu0 0.0
        %626 = vmatprep.subr.mxu0 0.0
        %627 = vmatpush2.msra.mxu0 0.0
        %628 = vmatprep.mubr.f32.mxu0 0.0
        %629 = vmatmul.mubr.f32.gmra.mxu0 %v562
        %v630 = vpop.f32.mrf.mxu0
        %v631 = vadd.f32 0.0, %v630
        %v632 = vpop.f32.mrf.mxu0
        %633 = vdwg.mxu0
        %634 = vrot.lane.b32.xlu0 %v409, 104
        %v635 = vpop.permute.xlu0 %634
        %v636 = vsel %vm338, %v635, 0
        %638 = vmatprep.subr.mxu0 0.0
        %639 = vmatpush1.msra.mxu0 0.0
        %640 = vmatprep.subr.mxu0 0.0
        %641 = vmatpush1.msra.mxu0 0.0
        %642 = vmatprep.subr.mxu0 0.0
        %643 = vmatpush1.msra.mxu0 0.0
        %644 = vmatprep.subr.mxu0 0.0
        %645 = vmatpush1.msra.mxu0 0.0
        %646 = vmatprep.subr.mxu0 0.0
        %647 = vmatpush1.msra.mxu0 0.0
        %648 = vmatprep.subr.mxu0 0.0
        %649 = vmatpush1.msra.mxu0 0.0
        %650 = vmatprep.subr.mxu0 0.0
        %651 = vmatpush1.msra.mxu0 0.0
        %652 = vmatprep.subr.mxu0 0.0
        %653 = vmatpush1.msra.mxu0 0.0
        %654 = vmatprep.subr.mxu0 0.0
        %655 = vmatpush1.msra.mxu0 0.0
        %656 = vmatprep.subr.mxu0 0.0
        %657 = vmatpush1.msra.mxu0 0.0
        %658 = vmatprep.subr.mxu0 0.0
        %659 = vmatpush1.msra.mxu0 0.0
        %660 = vmatprep.subr.mxu0 0.0
        %661 = vmatpush1.msra.mxu0 0.0
        %662 = vmatprep.subr.mxu0 0.0
        %663 = vmatpush1.msra.mxu0 0.0
        %664 = vmatprep.subr.mxu0 0.0
        %665 = vmatpush1.msra.mxu0 0.0
        %666 = vmatprep.subr.mxu0 0.0
        %667 = vmatpush1.msra.mxu0 0.0
        %668 = vmatprep.subr.mxu0 0.0
        %669 = vmatpush1.msra.mxu0 %v412
        %670 = vmatprep.subr.mxu0 0.0
        %671 = vmatpush2.msra.mxu0 0.0
        %672 = vmatprep.subr.mxu0 0.0
        %673 = vmatpush2.msra.mxu0 0.0
        %674 = vmatprep.subr.mxu0 0.0
        %675 = vmatpush2.msra.mxu0 0.0
        %676 = vmatprep.subr.mxu0 0.0
        %677 = vmatpush2.msra.mxu0 0.0
        %678 = vmatprep.subr.mxu0 0.0
        %679 = vmatpush2.msra.mxu0 0.0
        %680 = vmatprep.subr.mxu0 0.0
        %681 = vmatpush2.msra.mxu0 0.0
        %682 = vmatprep.subr.mxu0 0.0
        %683 = vmatpush2.msra.mxu0 0.0
        %684 = vmatprep.subr.mxu0 0.0
        %685 = vmatpush2.msra.mxu0 0.0
        %686 = vmatprep.subr.mxu0 0.0
        %687 = vmatpush2.msra.mxu0 0.0
        %688 = vmatprep.subr.mxu0 0.0
        %689 = vmatpush2.msra.mxu0 0.0
        %690 = vmatprep.subr.mxu0 0.0
        %691 = vmatpush2.msra.mxu0 0.0
        %692 = vmatprep.subr.mxu0 0.0
        %693 = vmatpush2.msra.mxu0 0.0
        %694 = vmatprep.subr.mxu0 0.0
        %695 = vmatpush2.msra.mxu0 0.0
        %696 = vmatprep.subr.mxu0 0.0
        %697 = vmatpush2.msra.mxu0 0.0
        %698 = vmatprep.subr.mxu0 0.0
        %699 = vmatpush2.msra.mxu0 0.0
        %700 = vmatprep.subr.mxu0 0.0
        %701 = vmatpush2.msra.mxu0 0.0
        %702 = vmatprep.mubr.f32.mxu0 0.0
        %703 = vmatmul.mubr.f32.gmra.mxu0 %v636
        %v704 = vpop.f32.mrf.mxu0
        %v705 = vadd.f32 0.0, %v704
        %v706 = vpop.f32.mrf.mxu0
        %707 = vdwg.mxu0
        %708 = vrot.lane.b32.xlu0 %v409, 96
        %v709 = vpop.permute.xlu0 %708
        %v710 = vsel %vm338, %v709, 0
        %712 = vmatprep.subr.mxu0 0.0
        %713 = vmatpush1.msra.mxu0 0.0
        %714 = vmatprep.subr.mxu0 0.0
        %715 = vmatpush1.msra.mxu0 0.0
        %716 = vmatprep.subr.mxu0 0.0
        %717 = vmatpush1.msra.mxu0 0.0
        %718 = vmatprep.subr.mxu0 0.0
        %719 = vmatpush1.msra.mxu0 0.0
        %720 = vmatprep.subr.mxu0 0.0
        %721 = vmatpush1.msra.mxu0 0.0
        %722 = vmatprep.subr.mxu0 0.0
        %723 = vmatpush1.msra.mxu0 0.0
        %724 = vmatprep.subr.mxu0 0.0
        %725 = vmatpush1.msra.mxu0 0.0
        %726 = vmatprep.subr.mxu0 0.0
        %727 = vmatpush1.msra.mxu0 0.0
        %728 = vmatprep.subr.mxu0 0.0
        %729 = vmatpush1.msra.mxu0 0.0
        %730 = vmatprep.subr.mxu0 0.0
        %731 = vmatpush1.msra.mxu0 0.0
        %732 = vmatprep.subr.mxu0 0.0
        %733 = vmatpush1.msra.mxu0 0.0
        %734 = vmatprep.subr.mxu0 0.0
        %735 = vmatpush1.msra.mxu0 0.0
        %736 = vmatprep.subr.mxu0 0.0
        %737 = vmatpush1.msra.mxu0 0.0
        %738 = vmatprep.subr.mxu0 0.0
        %739 = vmatpush1.msra.mxu0 0.0
        %740 = vmatprep.subr.mxu0 0.0
        %741 = vmatpush1.msra.mxu0 0.0
        %742 = vmatprep.subr.mxu0 0.0
        %743 = vmatpush1.msra.mxu0 %v412
        %744 = vmatprep.subr.mxu0 0.0
        %745 = vmatpush2.msra.mxu0 0.0
        %746 = vmatprep.subr.mxu0 0.0
        %747 = vmatpush2.msra.mxu0 0.0
        %748 = vmatprep.subr.mxu0 0.0
        %749 = vmatpush2.msra.mxu0 0.0
        %750 = vmatprep.subr.mxu0 0.0
        %751 = vmatpush2.msra.mxu0 0.0
        %752 = vmatprep.subr.mxu0 0.0
        %753 = vmatpush2.msra.mxu0 0.0
        %754 = vmatprep.subr.mxu0 0.0
        %755 = vmatpush2.msra.mxu0 0.0
        %756 = vmatprep.subr.mxu0 0.0
        %757 = vmatpush2.msra.mxu0 0.0
        %758 = vmatprep.subr.mxu0 0.0
        %759 = vmatpush2.msra.mxu0 0.0
        %760 = vmatprep.subr.mxu0 0.0
        %761 = vmatpush2.msra.mxu0 0.0
        %762 = vmatprep.subr.mxu0 0.0
        %763 = vmatpush2.msra.mxu0 0.0
        %764 = vmatprep.subr.mxu0 0.0
        %765 = vmatpush2.msra.mxu0 0.0
        %766 = vmatprep.subr.mxu0 0.0
        %767 = vmatpush2.msra.mxu0 0.0
        %768 = vmatprep.subr.mxu0 0.0
        %769 = vmatpush2.msra.mxu0 0.0
        %770 = vmatprep.subr.mxu0 0.0
        %771 = vmatpush2.msra.mxu0 0.0
        %772 = vmatprep.subr.mxu0 0.0
        %773 = vmatpush2.msra.mxu0 0.0
        %774 = vmatprep.subr.mxu0 0.0
        %775 = vmatpush2.msra.mxu0 0.0
        %776 = vmatprep.mubr.f32.mxu0 0.0
        %777 = vmatmul.mubr.f32.gmra.mxu0 %v710
        %v778 = vpop.f32.mrf.mxu0
        %v779 = vadd.f32 0.0, %v778
        %v780 = vpop.f32.mrf.mxu0
        %781 = vdwg.mxu0
        %782 = vrot.lane.b32.xlu0 %v409, 88
        %v783 = vpop.permute.xlu0 %782
        %v784 = vsel %vm338, %v783, 0
        %786 = vmatprep.subr.mxu0 0.0
        %787 = vmatpush1.msra.mxu0 0.0
        %788 = vmatprep.subr.mxu0 0.0
        %789 = vmatpush1.msra.mxu0 0.0
        %790 = vmatprep.subr.mxu0 0.0
        %791 = vmatpush1.msra.mxu0 0.0
        %792 = vmatprep.subr.mxu0 0.0
        %793 = vmatpush1.msra.mxu0 0.0
        %794 = vmatprep.subr.mxu0 0.0
        %795 = vmatpush1.msra.mxu0 0.0
        %796 = vmatprep.subr.mxu0 0.0
        %797 = vmatpush1.msra.mxu0 0.0
        %798 = vmatprep.subr.mxu0 0.0
        %799 = vmatpush1.msra.mxu0 0.0
        %800 = vmatprep.subr.mxu0 0.0
        %801 = vmatpush1.msra.mxu0 0.0
        %802 = vmatprep.subr.mxu0 0.0
        %803 = vmatpush1.msra.mxu0 0.0
        %804 = vmatprep.subr.mxu0 0.0
        %805 = vmatpush1.msra.mxu0 0.0
        %806 = vmatprep.subr.mxu0 0.0
        %807 = vmatpush1.msra.mxu0 0.0
        %808 = vmatprep.subr.mxu0 0.0
        %809 = vmatpush1.msra.mxu0 0.0
        %810 = vmatprep.subr.mxu0 0.0
        %811 = vmatpush1.msra.mxu0 0.0
        %812 = vmatprep.subr.mxu0 0.0
        %813 = vmatpush1.msra.mxu0 0.0
        %814 = vmatprep.subr.mxu0 0.0
        %815 = vmatpush1.msra.mxu0 0.0
        %816 = vmatprep.subr.mxu0 0.0
        %817 = vmatpush1.msra.mxu0 %v412
        %818 = vmatprep.subr.mxu0 0.0
        %819 = vmatpush2.msra.mxu0 0.0
        %820 = vmatprep.subr.mxu0 0.0
        %821 = vmatpush2.msra.mxu0 0.0
        %822 = vmatprep.subr.mxu0 0.0
        %823 = vmatpush2.msra.mxu0 0.0
        %824 = vmatprep.subr.mxu0 0.0
        %825 = vmatpush2.msra.mxu0 0.0
        %826 = vmatprep.subr.mxu0 0.0
        %827 = vmatpush2.msra.mxu0 0.0
        %828 = vmatprep.subr.mxu0 0.0
        %829 = vmatpush2.msra.mxu0 0.0
        %830 = vmatprep.subr.mxu0 0.0
        %831 = vmatpush2.msra.mxu0 0.0
        %832 = vmatprep.subr.mxu0 0.0
        %833 = vmatpush2.msra.mxu0 0.0
        %834 = vmatprep.subr.mxu0 0.0
        %835 = vmatpush2.msra.mxu0 0.0
        %836 = vmatprep.subr.mxu0 0.0
        %837 = vmatpush2.msra.mxu0 0.0
        %838 = vmatprep.subr.mxu0 0.0
        %839 = vmatpush2.msra.mxu0 0.0
        %840 = vmatprep.subr.mxu0 0.0
        %841 = vmatpush2.msra.mxu0 0.0
        %842 = vmatprep.subr.mxu0 0.0
        %843 = vmatpush2.msra.mxu0 0.0
        %844 = vmatprep.subr.mxu0 0.0
        %845 = vmatpush2.msra.mxu0 0.0
        %846 = vmatprep.subr.mxu0 0.0
        %847 = vmatpush2.msra.mxu0 0.0
        %848 = vmatprep.subr.mxu0 0.0
        %849 = vmatpush2.msra.mxu0 0.0
        %850 = vmatprep.mubr.f32.mxu0 0.0
        %851 = vmatmul.mubr.f32.gmra.mxu0 %v784
        %v852 = vpop.f32.mrf.mxu0
        %v853 = vadd.f32 0.0, %v852
        %v854 = vpop.f32.mrf.mxu0
        %855 = vdwg.mxu0
        %856 = vrot.lane.b32.xlu0 %v409, 80
        %v857 = vpop.permute.xlu0 %856
        %v858 = vsel %vm338, %v857, 0
        %860 = vmatprep.subr.mxu0 0.0
        %861 = vmatpush1.msra.mxu0 0.0
        %862 = vmatprep.subr.mxu0 0.0
        %863 = vmatpush1.msra.mxu0 0.0
        %864 = vmatprep.subr.mxu0 0.0
        %865 = vmatpush1.msra.mxu0 0.0
        %866 = vmatprep.subr.mxu0 0.0
        %867 = vmatpush1.msra.mxu0 0.0
        %868 = vmatprep.subr.mxu0 0.0
        %869 = vmatpush1.msra.mxu0 0.0
        %870 = vmatprep.subr.mxu0 0.0
        %871 = vmatpush1.msra.mxu0 0.0
        %872 = vmatprep.subr.mxu0 0.0
        %873 = vmatpush1.msra.mxu0 0.0
        %874 = vmatprep.subr.mxu0 0.0
        %875 = vmatpush1.msra.mxu0 0.0
        %876 = vmatprep.subr.mxu0 0.0
        %877 = vmatpush1.msra.mxu0 0.0
        %878 = vmatprep.subr.mxu0 0.0
        %879 = vmatpush1.msra.mxu0 0.0
        %880 = vmatprep.subr.mxu0 0.0
        %881 = vmatpush1.msra.mxu0 0.0
        %882 = vmatprep.subr.mxu0 0.0
        %883 = vmatpush1.msra.mxu0 0.0
        %884 = vmatprep.subr.mxu0 0.0
        %885 = vmatpush1.msra.mxu0 0.0
        %886 = vmatprep.subr.mxu0 0.0
        %887 = vmatpush1.msra.mxu0 0.0
        %888 = vmatprep.subr.mxu0 0.0
        %889 = vmatpush1.msra.mxu0 0.0
        %890 = vmatprep.subr.mxu0 0.0
        %891 = vmatpush1.msra.mxu0 %v412
        %892 = vmatprep.subr.mxu0 0.0
        %893 = vmatpush2.msra.mxu0 0.0
        %894 = vmatprep.subr.mxu0 0.0
        %895 = vmatpush2.msra.mxu0 0.0
        %896 = vmatprep.subr.mxu0 0.0
        %897 = vmatpush2.msra.mxu0 0.0
        %898 = vmatprep.subr.mxu0 0.0
        %899 = vmatpush2.msra.mxu0 0.0
        %900 = vmatprep.subr.mxu0 0.0
        %901 = vmatpush2.msra.mxu0 0.0
        %902 = vmatprep.subr.mxu0 0.0
        %903 = vmatpush2.msra.mxu0 0.0
        %904 = vmatprep.subr.mxu0 0.0
        %905 = vmatpush2.msra.mxu0 0.0
        %906 = vmatprep.subr.mxu0 0.0
        %907 = vmatpush2.msra.mxu0 0.0
        %908 = vmatprep.subr.mxu0 0.0
        %909 = vmatpush2.msra.mxu0 0.0
        %910 = vmatprep.subr.mxu0 0.0
        %911 = vmatpush2.msra.mxu0 0.0
        %912 = vmatprep.subr.mxu0 0.0
        %913 = vmatpush2.msra.mxu0 0.0
        %914 = vmatprep.subr.mxu0 0.0
        %915 = vmatpush2.msra.mxu0 0.0
        %916 = vmatprep.subr.mxu0 0.0
        %917 = vmatpush2.msra.mxu0 0.0
        %918 = vmatprep.subr.mxu0 0.0
        %919 = vmatpush2.msra.mxu0 0.0
        %920 = vmatprep.subr.mxu0 0.0
        %921 = vmatpush2.msra.mxu0 0.0
        %922 = vmatprep.subr.mxu0 0.0
        %923 = vmatpush2.msra.mxu0 0.0
        %924 = vmatprep.mubr.f32.mxu0 0.0
        %925 = vmatmul.mubr.f32.gmra.mxu0 %v858
        %v926 = vpop.f32.mrf.mxu0
        %v927 = vadd.f32 0.0, %v926
        %v928 = vpop.f32.mrf.mxu0
        %929 = vdwg.mxu0
        %930 = vrot.lane.b32.xlu0 %v409, 72
        %v931 = vpop.permute.xlu0 %930
        %v932 = vsel %vm338, %v931, 0
        %934 = vmatprep.subr.mxu0 0.0
        %935 = vmatpush1.msra.mxu0 0.0
        %936 = vmatprep.subr.mxu0 0.0
        %937 = vmatpush1.msra.mxu0 0.0
        %938 = vmatprep.subr.mxu0 0.0
        %939 = vmatpush1.msra.mxu0 0.0
        %940 = vmatprep.subr.mxu0 0.0
        %941 = vmatpush1.msra.mxu0 0.0
        %942 = vmatprep.subr.mxu0 0.0
        %943 = vmatpush1.msra.mxu0 0.0
        %944 = vmatprep.subr.mxu0 0.0
        %945 = vmatpush1.msra.mxu0 0.0
        %946 = vmatprep.subr.mxu0 0.0
        %947 = vmatpush1.msra.mxu0 0.0
        %948 = vmatprep.subr.mxu0 0.0
        %949 = vmatpush1.msra.mxu0 0.0
        %950 = vmatprep.subr.mxu0 0.0
        %951 = vmatpush1.msra.mxu0 0.0
        %952 = vmatprep.subr.mxu0 0.0
        %953 = vmatpush1.msra.mxu0 0.0
        %954 = vmatprep.subr.mxu0 0.0
        %955 = vmatpush1.msra.mxu0 0.0
        %956 = vmatprep.subr.mxu0 0.0
        %957 = vmatpush1.msra.mxu0 0.0
        %958 = vmatprep.subr.mxu0 0.0
        %959 = vmatpush1.msra.mxu0 0.0
        %960 = vmatprep.subr.mxu0 0.0
        %961 = vmatpush1.msra.mxu0 0.0
        %962 = vmatprep.subr.mxu0 0.0
        %963 = vmatpush1.msra.mxu0 0.0
        %964 = vmatprep.subr.mxu0 0.0
        %965 = vmatpush1.msra.mxu0 %v412
        %966 = vmatprep.subr.mxu0 0.0
        %967 = vmatpush2.msra.mxu0 0.0
        %968 = vmatprep.subr.mxu0 0.0
        %969 = vmatpush2.msra.mxu0 0.0
        %970 = vmatprep.subr.mxu0 0.0
        %971 = vmatpush2.msra.mxu0 0.0
        %972 = vmatprep.subr.mxu0 0.0
        %973 = vmatpush2.msra.mxu0 0.0
        %974 = vmatprep.subr.mxu0 0.0
        %975 = vmatpush2.msra.mxu0 0.0
        %976 = vmatprep.subr.mxu0 0.0
        %977 = vmatpush2.msra.mxu0 0.0
        %978 = vmatprep.subr.mxu0 0.0
        %979 = vmatpush2.msra.mxu0 0.0
        %980 = vmatprep.subr.mxu0 0.0
        %981 = vmatpush2.msra.mxu0 0.0
        %982 = vmatprep.subr.mxu0 0.0
        %983 = vmatpush2.msra.mxu0 0.0
        %984 = vmatprep.subr.mxu0 0.0
        %985 = vmatpush2.msra.mxu0 0.0
        %986 = vmatprep.subr.mxu0 0.0
        %987 = vmatpush2.msra.mxu0 0.0
        %988 = vmatprep.subr.mxu0 0.0
        %989 = vmatpush2.msra.mxu0 0.0
        %990 = vmatprep.subr.mxu0 0.0
        %991 = vmatpush2.msra.mxu0 0.0
        %992 = vmatprep.subr.mxu0 0.0
        %993 = vmatpush2.msra.mxu0 0.0
        %994 = vmatprep.subr.mxu0 0.0
        %995 = vmatpush2.msra.mxu0 0.0
        %996 = vmatprep.subr.mxu0 0.0
        %997 = vmatpush2.msra.mxu0 0.0
        %998 = vmatprep.mubr.f32.mxu0 0.0
        %999 = vmatmul.mubr.f32.gmra.mxu0 %v932
        %v1000 = vpop.f32.mrf.mxu0
        %v1001 = vadd.f32 0.0, %v1000
        %v1002 = vpop.f32.mrf.mxu0
        %1003 = vdwg.mxu0
        %1005 = vrot.lane.b32.xlu0 %v483, 16
        %v1006 = vpop.permute.xlu0 %1005
        %1009 = vrot.lane.b32.xlu0 %v557, 32
        %v1010 = vpop.permute.xlu0 %1009
        %1012 = vrot.lane.b32.xlu0 %v557, 48
        %v1013 = vpop.permute.xlu0 %1012
        %1016 = vrot.lane.b32.xlu0 %v631, 64
        %v1017 = vpop.permute.xlu0 %1016
        %1019 = vrot.lane.b32.xlu0 %v631, 80
        %v1020 = vpop.permute.xlu0 %1019
        %1023 = vrot.lane.b32.xlu0 %v705, 96
        %v1024 = vpop.permute.xlu0 %1023
        %1026 = vrot.lane.b32.xlu0 %v705, 112
        %v1027 = vpop.permute.xlu0 %1026
        %1030 = vrot.lane.b32.xlu0 %v779, 16
        %v1031 = vpop.permute.xlu0 %1030
        %1034 = vrot.lane.b32.xlu0 %v853, 32
        %v1035 = vpop.permute.xlu0 %1034
        %1037 = vrot.lane.b32.xlu0 %v853, 48
        %v1038 = vpop.permute.xlu0 %1037
        %1041 = vrot.lane.b32.xlu0 %v927, 64
        %v1042 = vpop.permute.xlu0 %1041
        %1044 = vrot.lane.b32.xlu0 %v927, 80
        %v1045 = vpop.permute.xlu0 %1044
        %1048 = vrot.lane.b32.xlu0 %v1001, 96
        %v1049 = vpop.permute.xlu0 %1048
        %1051 = vrot.lane.b32.xlu0 %v1001, 112
        %v1052 = vpop.permute.xlu0 %1051
        %vm1054 = vcmask 130048
        %v1055 = vsel %vm1054, %v483, %v1006
        %vm1056 = vcmask 261120
        %v1057 = vsel %vm1056, %v1055, %v1010
        %vm1058 = vcmask 392192
        %v1059 = vsel %vm1058, %v1057, %v1013
        %vm1060 = vcmask 523264
        %v1061 = vsel %vm1060, %v1059, %v1017
        %vm1062 = vcmask 654336
        %v1063 = vsel %vm1062, %v1061, %v1020
        %vm1064 = vcmask 785408
        %v1065 = vsel %vm1064, %v1063, %v1024
        %vm1066 = vcmask 916480
        %v1067 = vsel %vm1066, %v1065, %v1027
        %v1068 = vsel %vm1054, %v779, %v1031
        %v1069 = vsel %vm1056, %v1068, %v1035
        %v1070 = vsel %vm1058, %v1069, %v1038
        %v1071 = vsel %vm1060, %v1070, %v1042
        %v1072 = vsel %vm1062, %v1071, %v1045
        %v1073 = vsel %vm1064, %v1072, %v1049
        %v1074 = vsel %vm1066, %v1073, %v1052
        %v1076 = vcombine.high %v334, %v334
        %vm1077 = vcmask 31744
        %v1079 = vsel %vm1077, %v336, 0
        %vm1081 = vcmask 1043456
        %v1082 = vsel %vm1081, %v334, 0
        %v1084 = vsel %vm1081, %v1076, 0
        %1086 = vmatprep.subr.mxu0 0.0
        %1087 = vmatpush1.msra.mxu0 0.0
        %1088 = vmatprep.subr.mxu0 0.0
        %1089 = vmatpush1.msra.mxu0 0.0
        %1090 = vmatprep.subr.mxu0 0.0
        %1091 = vmatpush1.msra.mxu0 0.0
        %1092 = vmatprep.subr.mxu0 0.0
        %1093 = vmatpush1.msra.mxu0 0.0
        %1094 = vmatprep.subr.mxu0 0.0
        %1095 = vmatpush1.msra.mxu0 0.0
        %1096 = vmatprep.subr.mxu0 0.0
        %1097 = vmatpush1.msra.mxu0 0.0
        %1098 = vmatprep.subr.mxu0 0.0
        %1099 = vmatpush1.msra.mxu0 0.0
        %1100 = vmatprep.subr.mxu0 0.0
        %1101 = vmatpush1.msra.mxu0 0.0
        %1102 = vmatprep.subr.mxu0 0.0
        %1103 = vmatpush1.msra.mxu0 0.0
        %1104 = vmatprep.subr.mxu0 0.0
        %1105 = vmatpush1.msra.mxu0 0.0
        %1106 = vmatprep.subr.mxu0 0.0
        %1107 = vmatpush1.msra.mxu0 0.0
        %1108 = vmatprep.subr.mxu0 0.0
        %1109 = vmatpush1.msra.mxu0 0.0
        %1110 = vmatprep.subr.mxu0 0.0
        %1111 = vmatpush1.msra.mxu0 0.0
        %1112 = vmatprep.subr.mxu0 0.0
        %1113 = vmatpush1.msra.mxu0 0.0
        %1114 = vmatprep.subr.mxu0 0.0
        %1115 = vmatpush1.msra.mxu0 0.0
        %1116 = vmatprep.subr.mxu0 %v1084
        %1117 = vmatpush1.msra.mxu0 %v1082
        %1118 = vmatprep.subr.mxu0 0.0
        %1119 = vmatpush2.msra.mxu0 0.0
        %1120 = vmatprep.subr.mxu0 0.0
        %1121 = vmatpush2.msra.mxu0 0.0
        %1122 = vmatprep.subr.mxu0 0.0
        %1123 = vmatpush2.msra.mxu0 0.0
        %1124 = vmatprep.subr.mxu0 0.0
        %1125 = vmatpush2.msra.mxu0 0.0
        %1126 = vmatprep.subr.mxu0 0.0
        %1127 = vmatpush2.msra.mxu0 0.0
        %1128 = vmatprep.subr.mxu0 0.0
        %1129 = vmatpush2.msra.mxu0 0.0
        %1130 = vmatprep.subr.mxu0 0.0
        %1131 = vmatpush2.msra.mxu0 0.0
        %1132 = vmatprep.subr.mxu0 0.0
        %1133 = vmatpush2.msra.mxu0 0.0
        %1134 = vmatprep.subr.mxu0 0.0
        %1135 = vmatpush2.msra.mxu0 0.0
        %1136 = vmatprep.subr.mxu0 0.0
        %1137 = vmatpush2.msra.mxu0 0.0
        %1138 = vmatprep.subr.mxu0 0.0
        %1139 = vmatpush2.msra.mxu0 0.0
        %1140 = vmatprep.subr.mxu0 0.0
        %1141 = vmatpush2.msra.mxu0 0.0
        %1142 = vmatprep.subr.mxu0 0.0
        %1143 = vmatpush2.msra.mxu0 0.0
        %1144 = vmatprep.subr.mxu0 0.0
        %1145 = vmatpush2.msra.mxu0 0.0
        %1146 = vmatprep.subr.mxu0 0.0
        %1147 = vmatpush2.msra.mxu0 0.0
        %1148 = vmatprep.subr.mxu0 0.0
        %1149 = vmatpush2.msra.mxu0 0.0
        %1150 = vmatprep.mubr.f32.mxu0 0.0
        %1151 = vmatmul.mubr.f32.gmra.mxu0 %v1079
        %v1152 = vpop.f32.mrf.mxu0
        %v1153 = vadd.f32 %v1067, %v1152
        %v1154 = vpop.f32.mrf.mxu0
        %v1155 = vadd.f32 %v1074, %v1154
        %1156 = vdwg.mxu0
        %v1157 = vld [vmem:[%s5] sm:$0xff]
        %1159 = vset.pattern.permute.xlu0 0
        %1160 = vperm.xlu0 %1159, %v1157
        %v1161 = vpop.permute.xlu0 %1160
        %v1163 = vadd.f32 %v1153, %v1161
        %v1164 = vadd.f32 %v1155, %v1161
        %1165 = vst [vmem:[%s322] sm:$0xff] %v1163
        %1166 = vst [vmem:[%s322 + $0x8] sm:$0xff] %v1164
        %s1167 = sand.u32 %s186, 1
        %s1168 = scalar_lea.sflag [#allocation4], %s1167
        %s1169 = sand.u32 %s186, 1
        %s1170 = smul.addr %s1169, 16
        %s1171 = scalar_lea.vmem [#allocation7], %s1170
        // Predicated region
        $region53: #{tpu_custom_call.1} parent=43 // pred_check
          %p1172 = pneg %p196
        $region54: #{tpu_custom_call.1} parent=43 // pred_check_branch
          %1174 = sbr.rel (%p1172) target = $region56
        $region55: #{tpu_custom_call.1} parent=43 // pred_region
          %s1175 = smul.u32 2, %s29
          %s1177 = ssub.s32 256, 256
          %1178 = vsyncadd %s1168, %s1177
          %s1179 = smul.addr %s28, 2
          %s1180 = sadd.s32 %s1175, %s1179
          %s1181 = smul.addr %s1180, 128
          %s1182 = scalar_lea.hbm %s6, %s1181
          %s1184 = sshll.u32 %s1171, 4
          %s1185 = int_to_ptr.vmem [resolvable:$true] %s1184
          %1187 = dma.vmem_to_hbm [thread:$0]  %s1185, 256, %s1182, %s1168
        $region56: #{tpu_custom_call.1} parent=43 // pred_fallthru
          _
      $region44: #{tpu_custom_call.1} parent=5 // pred_fallthru
        _
      %p1188 = scmp.le.s32.totalorder 2, %s19
      // Predicated region
      $region57: #{tpu_custom_call.1} parent=5 // pred_check
        %p1189 = pneg %p1188
      $region58: #{tpu_custom_call.1} parent=5 // pred_check_branch
        %1191 = sbr.rel (%p1189) target = $region60
      $region59: #{tpu_custom_call.1} parent=5 // pred_region
        %s1192 = ssub.s32 %s19, 2
        // Predicated region
        $region61: #{tpu_custom_call.1} parent=59 // pred_check
          %p1193 = pneg %p202
        $region62: #{tpu_custom_call.1} parent=59 // pred_check_branch
          %1195 = sbr.rel (%p1193) target = $region64
        $region63: #{tpu_custom_call.1} parent=59 // pred_region
          %s1196 = sand.u32 %s187, 1
          %s1197 = scalar_lea.sflag [#allocation4], %s1196
          %s1198 = sand.u32 %s187, 1
          %s1199 = smul.addr %s1198, 16
          %s1200 = scalar_lea.vmem [#allocation7], %s1199
          %1201 = dma.done %s1197, 256
        $region64: #{tpu_custom_call.1} parent=59 // pred_fallthru
          _
      $region60: #{tpu_custom_call.1} parent=5 // pred_fallthru
        _
    $region6: #{tpu_custom_call.1} parent=1 // loop_footer
      %s23 = sadd.s32 1, %s19
    $region7: #{tpu_custom_call.1} parent=1 // loop_footer_branch
      %18 = sbr.rel target = $region3
    $region8: #{tpu_custom_call.1} parent=1 // loop_exit
      _
    %1202 = vsyncpa [#allocation3], 1
    %s1203 = scalar_lea.sflag [#allocation3], 1
    %1204 = vsyncpa %s1203, 1
    %1205 = vsyncpa [#allocation6], 1
    %1206 = vsyncpa [#allocation4], 1
    %s1207 = scalar_lea.sflag [#allocation4], 1
    %1208 = vsyncpa %s1207, 1

</llo_original>
